<compile_context>
chip_gen: v7x
topology: tpu7x:2x2x1
jax: 0.10.0
libtpu: 0.0.40
codegen_flags: <defaults>
</compile_context>

<pallas_src>
import jax
import jax.numpy as jnp
from jax.experimental import pallas as pl
from jax.experimental.pallas import tpu as pltpu

EPS = 1e-5


# --------------------------------------------------------------------------
# Pallas kernels
# --------------------------------------------------------------------------
def conv_relu_stats_kernel(p_ref, w_ref, y_ref, stats_ref):
    """y = relu(patches @ w); emit per-tile (sum, sum-of-squares) partials."""
    y = jnp.dot(p_ref[...], w_ref[...], preferred_element_type=jnp.float32)
    y = jnp.maximum(y, 0.0)
    s = jnp.sum(y, axis=0, keepdims=True)          # (1, CO)
    sq = jnp.sum(y * y, axis=0, keepdims=True)     # (1, CO)
    stats_ref[...] = jnp.concatenate([s, sq], axis=0)[None]   # (1, 2, CO)
    y_ref[...] = y.astype(y_ref.dtype)


def conv_res_relu_stats_kernel(p_ref, w_ref, x_ref, y_ref, stats_ref):
    """z = relu(x + patches @ w); emit per-tile (sum, sum-of-squares) partials."""
    z = jnp.dot(p_ref[...], w_ref[...], preferred_element_type=jnp.float32)
    z = jnp.maximum(x_ref[...].astype(jnp.float32) + z, 0.0)
    s = jnp.sum(z, axis=0, keepdims=True)
    sq = jnp.sum(z * z, axis=0, keepdims=True)
    stats_ref[...] = jnp.concatenate([s, sq], axis=0)[None]
    y_ref[...] = z.astype(y_ref.dtype)


def affine_kernel(y_ref, scale_ref, shift_ref, o_ref):
    """o = y * scale + shift  (BatchNorm with precomputed per-channel terms)."""
    y = y_ref[...].astype(jnp.float32)
    o_ref[...] = (y * scale_ref[...] + shift_ref[...]).astype(o_ref.dtype)


# --------------------------------------------------------------------------
# Glue (plain JAX): im2col, tiling helpers, pallas_call wrappers
# --------------------------------------------------------------------------
def _round_up(x, m):
    return ((x + m - 1) // m) * m


def _pad_rows(a, rows):
    if a.shape[0] == rows:
        return a
    return jnp.pad(a, ((0, rows - a.shape[0]), (0, 0)))


def _im2col(x_nhwc, k=3):
    """kxk 'SAME' patches; rows ordered (n,h,w), cols (kh,kw,c)."""
    N, H, W, C = x_nhwc.shape
    pad = k // 2
    xp = jnp.pad(x_nhwc, ((0, 0), (pad, pad), (pad, pad), (0, 0)))
    cols = [xp[:, dh:dh + H, dw:dw + W, :] for dh in range(k) for dw in range(k)]
    return jnp.concatenate(cols, axis=-1).reshape(N * H * W, k * k * C)


def _vmem_limit_bytes():
    """Per-generation scoped-VMEM limit (<=48 MiB on v7x, up to 96 MiB else)."""
    try:
        cap = int(pltpu.get_tpu_info().vmem_capacity_bytes)
    except Exception:
        cap = 64 * 1024 * 1024        # conservative fallback (v7x per-TC size)
    return min(96 * 1024 * 1024, (cap * 3) // 4)


def _choose_tm(m_rows, bytes_per_row, budget_bytes, cap=2048, floor=128):
    """Largest power-of-two row tile in [floor, cap] whose streaming footprint
    fits the budget; never wider than the pow2-rounded row count."""
    tm = min(cap, max(floor, pl.next_power_of_2(max(int(m_rows), 1))))
    while tm > floor and tm * bytes_per_row > budget_bytes:
        tm //= 2
    return tm


def _conv_relu_stats(patches, w2d, x_res=None, *, tm, vmem_limit):
    """Pipelined matmul (+ optional residual) + ReLU + per-tile BN partials."""
    Mp, KC = patches.shape
    CO = w2d.shape[1]
    assert Mp % tm == 0, "row count must be a multiple of the row tile"
    ntiles = Mp // tm

    in_specs = [pl.BlockSpec((tm, KC), lambda i: (i, 0)),
                pl.BlockSpec((KC, CO), lambda i: (0, 0))]     # resident weight
    args = [patches, w2d]
    if x_res is None:
        kernel = conv_relu_stats_kernel
        res_bytes = 0
    else:
        in_specs.append(pl.BlockSpec((tm, x_res.shape[1]), lambda i: (i, 0)))
        args.append(x_res)
        kernel = conv_res_relu_stats_kernel
        res_bytes = x_res.size * x_res.dtype.itemsize

    out_shape = (jax.ShapeDtypeStruct((Mp, CO), jnp.bfloat16),     # pre-BN act.
                 jax.ShapeDtypeStruct((ntiles, 2, CO), jnp.float32))  # partials
    out_specs = (pl.BlockSpec((tm, CO), lambda i: (i, 0)),
                 pl.BlockSpec((1, 2, CO), lambda i: (i, 0, 0)))

    cost = pl.CostEstimate(
        flops=int(2 * Mp * KC * CO),
        transcendentals=0,
        bytes_accessed=int(patches.size * 2 + w2d.size * 2 + Mp * CO * 2
                           + ntiles * 2 * CO * 4 + res_bytes))

    return pl.pallas_call(
        kernel,
        grid_spec=pltpu.PrefetchScalarGridSpec(
            num_scalar_prefetch=0, grid=(ntiles,),
            in_specs=in_specs, out_specs=out_specs),
        out_shape=out_shape,
        compiler_params=pltpu.CompilerParams(
            dimension_semantics=("parallel",),     # per-tile partials -> megacore OK
            vmem_limit_bytes=vmem_limit),
        cost_estimate=cost,
    )(*args)


def _affine(y, scale, shift, out_dtype, *, tm, vmem_limit):
    """Apply BN as out = y * scale + shift, tiled over rows (parallel)."""
    Mp, CO = y.shape
    assert Mp % tm == 0, "row count must be a multiple of the affine row tile"
    grid = (Mp // tm,)
    return pl.pallas_call(
        affine_kernel,
        grid_spec=pltpu.PrefetchScalarGridSpec(
            num_scalar_prefetch=0, grid=grid,
            in_specs=[pl.BlockSpec((tm, CO), lambda i: (i, 0)),
                      pl.BlockSpec((1, CO), lambda i: (0, 0)),
                      pl.BlockSpec((1, CO), lambda i: (0, 0))],
            out_specs=pl.BlockSpec((tm, CO), lambda i: (i, 0))),
        out_shape=jax.ShapeDtypeStruct((Mp, CO), out_dtype),
        compiler_params=pltpu.CompilerParams(
            dimension_semantics=("parallel",),
            vmem_limit_bytes=vmem_limit),
        cost_estimate=pl.CostEstimate(
            flops=int(2 * Mp * CO), transcendentals=0,
            bytes_accessed=int(y.size * y.dtype.itemsize
                               + Mp * CO * jnp.dtype(out_dtype).itemsize)),
    )(y, scale, shift)


def _bn_scale_shift(stats, m_true, gamma, beta):
    """Reduce per-tile partials -> global batch stats -> scale/shift vectors."""
    s = jnp.sum(stats[:, 0, :], axis=0, keepdims=True)    # (1, CO)
    ss = jnp.sum(stats[:, 1, :], axis=0, keepdims=True)   # (1, CO)
    mean = s / float(m_true)
    # TODO(synk): E[y^2]-E[y]^2 in f32 cancels for very large M; switch to a
    # shifted / two-pass accumulation if this block is used at huge batch*HW.
    var = jnp.maximum(ss / float(m_true) - mean * mean, 0.0)
    scale = gamma * jax.lax.rsqrt(var + EPS)
    shift = beta - mean * scale
    return scale, shift


def resnet_block_forward(x_nchw, params, k=3, tm_mm=None, tm_affine=None):
    """Pallas implementation of ResNetBlock.forward. Input/output are NCHW."""
    w1, g1, b1, w2, g2, b2 = params          # w* HWIO, gamma/beta shaped (1, C)
    N, C, H, W = x_nchw.shape
    C2 = 2 * C
    M = N * H * W

    KC1, CO1 = k * k * C, C2
    KC2, CO2 = k * k * C2, C

    vmem_limit = _vmem_limit_bytes()
    tile_budget = vmem_limit // 3            # headroom for dbl-buffering/scratch
    if tm_mm is None:                        # bf16 streams, double-buffered
        tm_mm = _choose_tm(M, 4 * max(KC1 + CO1, KC2 + CO2 + C), tile_budget)
    if tm_affine is None:                    # pure HBM streaming -> bigger tile
        tm_affine = _choose_tm(M, 2 * (CO2 * 2 + CO2 * 4), tile_budget, cap=8192)

    tm_max = max(tm_mm, tm_affine)
    Mp = _round_up(M, tm_max)
    assert Mp % tm_mm == 0 and Mp % tm_affine == 0, \
        "row tiles must be powers of two (so the larger is a common multiple)"

    x = jnp.transpose(x_nchw, (0, 2, 3, 1))          # NCHW -> NHWC
    x_bf = x.astype(jnp.bfloat16)

    # ---- stage 1: y1 = relu(conv1(x)), global BN1 stats, o = BN1(y1) ----
    p1 = _pad_rows(_im2col(x_bf, k), Mp)                       # (Mp, KC1) bf16
    w1_2d = w1.reshape(KC1, CO1).astype(jnp.bfloat16)
    y1, st1 = _conv_relu_stats(p1, w1_2d, tm=tm_mm, vmem_limit=vmem_limit)
    scale1, shift1 = _bn_scale_shift(st1, M, g1, b1)

    # Stage-1 affine in the wrapper: XLA fuses it into the stage-2 im2col build,
    # saving a full read+write of the (Mp, CO1) intermediate and a kernel launch.
    o_img = (y1[:M].astype(jnp.float32) * scale1 + shift1) \
        .astype(jnp.bfloat16).reshape(N, H, W, C2)

    # ---- stage 2: z = relu(x + conv2(o)), global BN2 stats, out = BN2(z) ----
    p2 = _pad_rows(_im2col(o_img, k), Mp)                      # (Mp, KC2) bf16
    w2_2d = w2.reshape(KC2, CO2).astype(jnp.bfloat16)
    x_res = _pad_rows(x_bf.reshape(M, C), Mp)                  # (Mp, C) bf16
    z, st2 = _conv_relu_stats(p2, w2_2d, x_res, tm=tm_mm, vmem_limit=vmem_limit)
    scale2, shift2 = _bn_scale_shift(st2, M, g2, b2)

    out = _affine(z, scale2, shift2, jnp.float32,
                  tm=tm_affine, vmem_limit=vmem_limit)         # (Mp, C) f32
    out = out[:M].reshape(N, H, W, C)
    return jnp.transpose(out, (0, 3, 1, 2))                    # NHWC -> NCHW


# --------------------------------------------------------------------------
# Pure-JAX reference (for correctness check)
# --------------------------------------------------------------------------
def resnet_block_reference(x_nchw, params):
    w1, g1, b1, w2, g2, b2 = params
    x = jnp.transpose(x_nchw, (0, 2, 3, 1))

    def conv(v, w):
        return jax.lax.conv_general_dilated(
            v, w, (1, 1), "SAME",
            dimension_numbers=("NHWC", "HWIO", "NHWC"),
            precision=jax.lax.Precision.HIGHEST)

    def bn(y, g, b):
        m = y.mean(axis=(0, 1, 2), keepdims=True)
        v = ((y - m) ** 2).mean(axis=(0, 1, 2), keepdims=True)
        return (y - m) * jax.lax.rsqrt(v + EPS) * g.reshape(1, 1, 1, -1) \
            + b.reshape(1, 1, 1, -1)

    o = bn(jax.nn.relu(conv(x, w1)), g1, b1)
    out = bn(jax.nn.relu(x + conv(o, w2)), g2, b2)
    return jnp.transpose(out, (0, 3, 1, 2))


# --------------------------------------------------------------------------
if __name__ == "__main__":
    N, C, H, W, K = 2, 4, 16, 16, 3
    C2 = 2 * C

    key = jax.random.PRNGKey(0)
    kx, kw1, kw2, kg1, kb1, kg2, kb2 = jax.random.split(key, 7)

    x = jax.random.normal(kx, (N, C, H, W), jnp.float32)
    w1 = jax.random.normal(kw1, (K, K, C, C2), jnp.float32) * 0.1   # l1 (HWIO)
    w2 = jax.random.normal(kw2, (K, K, C2, C), jnp.float32) * 0.1   # l2 (HWIO)
    g1 = 1.0 + 0.1 * jax.random.normal(kg1, (1, C2), jnp.float32)   # b1.weight
    b1 = 0.1 * jax.random.normal(kb1, (1, C2), jnp.float32)         # b1.bias
    g2 = 1.0 + 0.1 * jax.random.normal(kg2, (1, C), jnp.float32)    # b2.weight
    b2 = 0.1 * jax.random.normal(kb2, (1, C), jnp.float32)          # b2.bias
    params = (w1, g1, b1, w2, g2, b2)

    # Small explicit tiles so the toy demo exercises the multi-tile partial-
    # stats reduction (4-wide conv grid, 2-wide affine grid).  The production
    # default (tm_*=None) auto-sizes >=512-row tiles from the per-generation
    # VMEM budget per the perf review.
    fwd = jax.jit(lambda xx, pp: resnet_block_forward(
        xx, pp, k=K, tm_mm=128, tm_affine=256))
    out = jax.block_until_ready(fwd(x, params))

    ref = resnet_block_reference(x, params)
    assert out.shape == (N, C, H, W)
    # Tolerance accounts for bf16 MXU operands, bf16 intermediates and the
    # bf16 residual path.
    assert jnp.allclose(out, ref, rtol=3e-2, atol=3e-2), "mismatch vs reference"

    print("KERNEL_OK")
</pallas_src>

<mosaic_0001>
module attributes {stable_mosaic.version = 11 : i64} {
  func.func @conv_relu_stats_kernel(%arg0: i32, %arg1: memref<128x36xbf16, #tpu.memory_space<vmem>>, %arg2: memref<36x8xbf16, #tpu.memory_space<vmem>>, %arg3: memref<128x8xbf16, #tpu.memory_space<vmem>>, %arg4: memref<1x2x8xf32, #tpu.memory_space<vmem>>) attributes {dimension_semantics = [#tpu.dimension_semantics<parallel>], iteration_bounds = array<i64: 4>, scalar_prefetch = 0 : i64, scratch_operands = 0 : i64, tpu.core_type = #tpu.core_type<tc>, window_params = [{transform_indices = @transform_0, window_bounds = array<i64: 128, 36>}, {pipeline_mode = #tpu.pipeline_mode<synchronous>, transform_indices = @transform_1, window_bounds = array<i64: 36, 8>}, {transform_indices = @transform_2, window_bounds = array<i64: 128, 8>}, {transform_indices = @transform_3, window_bounds = array<i64: 1, 2, 8>}]} {
    %c0 = arith.constant 0 : index
    %c0_0 = arith.constant 0 : index
    %0 = vector.load %arg1[%c0, %c0_0] : memref<128x36xbf16, #tpu.memory_space<vmem>>, vector<128x36xbf16>
    %c0_1 = arith.constant 0 : index
    %c0_2 = arith.constant 0 : index
    %1 = vector.load %arg2[%c0_1, %c0_2] : memref<36x8xbf16, #tpu.memory_space<vmem>>, vector<36x8xbf16>
    %cst = arith.constant dense<0.000000e+00> : vector<128x8xf32>
    %2 = tpu.matmul %0, %1, %cst {dimension_numbers = #tpu.dot_dimension_numbers<[1], [0], [0], [1], [0, 0, 1, 1], [], []>} : vector<128x36xbf16>, vector<36x8xbf16>, vector<128x8xf32> -> vector<128x8xf32>
    %cst_3 = arith.constant 0.000000e+00 : f32
    %3 = vector.broadcast %cst_3 : f32 to vector<128x8xf32>
    %4 = arith.maximumf %2, %3 : vector<128x8xf32>
    %cst_4 = arith.constant dense<0.000000e+00> : vector<8xf32>
    %5 = vector.multi_reduction <add>, %4, %cst_4 [0] : vector<128x8xf32> to vector<8xf32>
    %6 = vector.shape_cast %5 : vector<8xf32> to vector<1x8xf32>
    %7 = arith.mulf %4, %4 : vector<128x8xf32>
    %cst_5 = arith.constant dense<0.000000e+00> : vector<8xf32>
    %8 = vector.multi_reduction <add>, %7, %cst_5 [0] : vector<128x8xf32> to vector<8xf32>
    %9 = vector.shape_cast %8 : vector<8xf32> to vector<1x8xf32>
    %10 = tpu.concatenate %6, %9 in 0 : vector<1x8xf32>, vector<1x8xf32> -> vector<2x8xf32>
    %11 = vector.shape_cast %10 : vector<2x8xf32> to vector<1x2x8xf32>
    %c0_6 = arith.constant 0 : index
    %c0_7 = arith.constant 0 : index
    %c0_8 = arith.constant 0 : index
    %12 = vector.load %arg4[%c0_6, %c0_7, %c0_8] : memref<1x2x8xf32, #tpu.memory_space<vmem>>, vector<1x2x8xf32>
    tpu.vector_store %arg4[%c0_6, %c0_7, %c0_8], %11 {strides = array<i32>} : memref<1x2x8xf32, #tpu.memory_space<vmem>>, vector<1x2x8xf32>,
    %13 = arith.truncf %4 : vector<128x8xf32> to vector<128x8xbf16>
    %c0_9 = arith.constant 0 : index
    %c0_10 = arith.constant 0 : index
    %14 = vector.load %arg3[%c0_9, %c0_10] : memref<128x8xbf16, #tpu.memory_space<vmem>>, vector<128x8xbf16>
    tpu.vector_store %arg3[%c0_9, %c0_10], %13 {strides = array<i32>} : memref<128x8xbf16, #tpu.memory_space<vmem>>, vector<128x8xbf16>,
    return
  }
  func.func @transform_0(%arg0: i32) -> (i32, i32) {
    %c0_i32 = arith.constant 0 : i32
    %c0_i32_0 = arith.constant 0 : i32
    return %arg0, %c0_i32 : i32, i32
  }
  func.func @transform_1(%arg0: i32) -> (i32, i32) {
    %c0_i32 = arith.constant 0 : i32
    %c0_i32_0 = arith.constant 0 : i32
    %c0_i32_1 = arith.constant 0 : i32
    return %c0_i32, %c0_i32_0 : i32, i32
  }
  func.func @transform_2(%arg0: i32) -> (i32, i32) {
    %c0_i32 = arith.constant 0 : i32
    %c0_i32_0 = arith.constant 0 : i32
    return %arg0, %c0_i32 : i32, i32
  }
  func.func @transform_3(%arg0: i32) -> (i32, i32, i32) {
    %c0_i32 = arith.constant 0 : i32
    %c0_i32_0 = arith.constant 0 : i32
    %c0_i32_1 = arith.constant 0 : i32
    return %arg0, %c0_i32, %c0_i32_0 : i32, i32, i32
  }
}

module attributes {stable_mosaic.version = 11 : i64} {
  func.func @conv_res_relu_stats_kernel(%arg0: i32, %arg1: memref<128x72xbf16, #tpu.memory_space<vmem>>, %arg2: memref<72x4xbf16, #tpu.memory_space<vmem>>, %arg3: memref<128x4xbf16, #tpu.memory_space<vmem>>, %arg4: memref<128x4xbf16, #tpu.memory_space<vmem>>, %arg5: memref<1x2x4xf32, #tpu.memory_space<vmem>>) attributes {dimension_semantics = [#tpu.dimension_semantics<parallel>], iteration_bounds = array<i64: 4>, scalar_prefetch = 0 : i64, scratch_operands = 0 : i64, tpu.core_type = #tpu.core_type<tc>, window_params = [{transform_indices = @transform_0, window_bounds = array<i64: 128, 72>}, {pipeline_mode = #tpu.pipeline_mode<synchronous>, transform_indices = @transform_1, window_bounds = array<i64: 72, 4>}, {transform_indices = @transform_2, window_bounds = array<i64: 128, 4>}, {transform_indices = @transform_3, window_bounds = array<i64: 128, 4>}, {transform_indices = @transform_4, window_bounds = array<i64: 1, 2, 4>}]} {
    %c0 = arith.constant 0 : index
    %c0_0 = arith.constant 0 : index
    %0 = vector.load %arg1[%c0, %c0_0] : memref<128x72xbf16, #tpu.memory_space<vmem>>, vector<128x72xbf16>
    %c0_1 = arith.constant 0 : index
    %c0_2 = arith.constant 0 : index
    %1 = vector.load %arg2[%c0_1, %c0_2] : memref<72x4xbf16, #tpu.memory_space<vmem>>, vector<72x4xbf16>
    %cst = arith.constant dense<0.000000e+00> : vector<128x4xf32>
    %2 = tpu.matmul %0, %1, %cst {dimension_numbers = #tpu.dot_dimension_numbers<[1], [0], [0], [1], [0, 0, 1, 1], [], []>} : vector<128x72xbf16>, vector<72x4xbf16>, vector<128x4xf32> -> vector<128x4xf32>
    %c0_3 = arith.constant 0 : index
    %c0_4 = arith.constant 0 : index
    %3 = vector.load %arg3[%c0_3, %c0_4] : memref<128x4xbf16, #tpu.memory_space<vmem>>, vector<128x4xbf16>
    %4 = arith.extf %3 : vector<128x4xbf16> to vector<128x4xf32>
    %5 = arith.addf %4, %2 : vector<128x4xf32>
    %cst_5 = arith.constant 0.000000e+00 : f32
    %6 = vector.broadcast %cst_5 : f32 to vector<128x4xf32>
    %7 = arith.maximumf %5, %6 : vector<128x4xf32>
    %cst_6 = arith.constant dense<0.000000e+00> : vector<4xf32>
    %8 = vector.multi_reduction <add>, %7, %cst_6 [0] : vector<128x4xf32> to vector<4xf32>
    %9 = vector.shape_cast %8 : vector<4xf32> to vector<1x4xf32>
    %10 = arith.mulf %7, %7 : vector<128x4xf32>
    %cst_7 = arith.constant dense<0.000000e+00> : vector<4xf32>
    %11 = vector.multi_reduction <add>, %10, %cst_7 [0] : vector<128x4xf32> to vector<4xf32>
    %12 = vector.shape_cast %11 : vector<4xf32> to vector<1x4xf32>
    %13 = tpu.concatenate %9, %12 in 0 : vector<1x4xf32>, vector<1x4xf32> -> vector<2x4xf32>
    %14 = vector.shape_cast %13 : vector<2x4xf32> to vector<1x2x4xf32>
    %c0_8 = arith.constant 0 : index
    %c0_9 = arith.constant 0 : index
    %c0_10 = arith.constant 0 : index
    %15 = vector.load %arg5[%c0_8, %c0_9, %c0_10] : memref<1x2x4xf32, #tpu.memory_space<vmem>>, vector<1x2x4xf32>
    tpu.vector_store %arg5[%c0_8, %c0_9, %c0_10], %14 {strides = array<i32>} : memref<1x2x4xf32, #tpu.memory_space<vmem>>, vector<1x2x4xf32>,
    %16 = arith.truncf %7 : vector<128x4xf32> to vector<128x4xbf16>
    %c0_11 = arith.constant 0 : index
    %c0_12 = arith.constant 0 : index
    %17 = vector.load %arg4[%c0_11, %c0_12] : memref<128x4xbf16, #tpu.memory_space<vmem>>, vector<128x4xbf16>
    tpu.vector_store %arg4[%c0_11, %c0_12], %16 {strides = array<i32>} : memref<128x4xbf16, #tpu.memory_space<vmem>>, vector<128x4xbf16>,
    return
  }
  func.func @transform_0(%arg0: i32) -> (i32, i32) {
    %c0_i32 = arith.constant 0 : i32
    %c0_i32_0 = arith.constant 0 : i32
    return %arg0, %c0_i32 : i32, i32
  }
  func.func @transform_1(%arg0: i32) -> (i32, i32) {
    %c0_i32 = arith.constant 0 : i32
    %c0_i32_0 = arith.constant 0 : i32
    %c0_i32_1 = arith.constant 0 : i32
    return %c0_i32, %c0_i32_0 : i32, i32
  }
  func.func @transform_2(%arg0: i32) -> (i32, i32) {
    %c0_i32 = arith.constant 0 : i32
    %c0_i32_0 = arith.constant 0 : i32
    return %arg0, %c0_i32 : i32, i32
  }
  func.func @transform_3(%arg0: i32) -> (i32, i32) {
    %c0_i32 = arith.constant 0 : i32
    %c0_i32_0 = arith.constant 0 : i32
    return %arg0, %c0_i32 : i32, i32
  }
  func.func @transform_4(%arg0: i32) -> (i32, i32, i32) {
    %c0_i32 = arith.constant 0 : i32
    %c0_i32_0 = arith.constant 0 : i32
    %c0_i32_1 = arith.constant 0 : i32
    return %arg0, %c0_i32, %c0_i32_0 : i32, i32, i32
  }
}

module attributes {stable_mosaic.version = 11 : i64} {
  func.func @affine_kernel(%arg0: i32, %arg1: memref<256x4xbf16, #tpu.memory_space<vmem>>, %arg2: memref<1x4xf32, #tpu.memory_space<vmem>>, %arg3: memref<1x4xf32, #tpu.memory_space<vmem>>, %arg4: memref<256x4xf32, #tpu.memory_space<vmem>>) attributes {dimension_semantics = [#tpu.dimension_semantics<parallel>], iteration_bounds = array<i64: 2>, scalar_prefetch = 0 : i64, scratch_operands = 0 : i64, tpu.core_type = #tpu.core_type<tc>, window_params = [{transform_indices = @transform_0, window_bounds = array<i64: 256, 4>}, {pipeline_mode = #tpu.pipeline_mode<synchronous>, transform_indices = @transform_1, window_bounds = array<i64: 1, 4>}, {pipeline_mode = #tpu.pipeline_mode<synchronous>, transform_indices = @transform_2, window_bounds = array<i64: 1, 4>}, {transform_indices = @transform_3, window_bounds = array<i64: 256, 4>}]} {
    %c0 = arith.constant 0 : index
    %c0_0 = arith.constant 0 : index
    %0 = vector.load %arg1[%c0, %c0_0] : memref<256x4xbf16, #tpu.memory_space<vmem>>, vector<256x4xbf16>
    %1 = arith.extf %0 : vector<256x4xbf16> to vector<256x4xf32>
    %c0_1 = arith.constant 0 : index
    %c0_2 = arith.constant 0 : index
    %2 = vector.load %arg2[%c0_1, %c0_2] : memref<1x4xf32, #tpu.memory_space<vmem>>, vector<1x4xf32>
    %3 = vector.broadcast %2 : vector<1x4xf32> to vector<256x4xf32>
    %4 = arith.mulf %1, %3 : vector<256x4xf32>
    %c0_3 = arith.constant 0 : index
    %c0_4 = arith.constant 0 : index
    %5 = vector.load %arg3[%c0_3, %c0_4] : memref<1x4xf32, #tpu.memory_space<vmem>>, vector<1x4xf32>
    %6 = vector.broadcast %5 : vector<1x4xf32> to vector<256x4xf32>
    %7 = arith.addf %4, %6 : vector<256x4xf32>
    %c0_5 = arith.constant 0 : index
    %c0_6 = arith.constant 0 : index
    %8 = vector.load %arg4[%c0_5, %c0_6] : memref<256x4xf32, #tpu.memory_space<vmem>>, vector<256x4xf32>
    tpu.vector_store %arg4[%c0_5, %c0_6], %7 {strides = array<i32>} : memref<256x4xf32, #tpu.memory_space<vmem>>, vector<256x4xf32>,
    return
  }
  func.func @transform_0(%arg0: i32) -> (i32, i32) {
    %c0_i32 = arith.constant 0 : i32
    %c0_i32_0 = arith.constant 0 : i32
    return %arg0, %c0_i32 : i32, i32
  }
  func.func @transform_1(%arg0: i32) -> (i32, i32) {
    %c0_i32 = arith.constant 0 : i32
    %c0_i32_0 = arith.constant 0 : i32
    %c0_i32_1 = arith.constant 0 : i32
    return %c0_i32, %c0_i32_0 : i32, i32
  }
  func.func @transform_2(%arg0: i32) -> (i32, i32) {
    %c0_i32 = arith.constant 0 : i32
    %c0_i32_0 = arith.constant 0 : i32
    %c0_i32_1 = arith.constant 0 : i32
    return %c0_i32, %c0_i32_0 : i32, i32
  }
  func.func @transform_3(%arg0: i32) -> (i32, i32) {
    %c0_i32 = arith.constant 0 : i32
    %c0_i32_0 = arith.constant 0 : i32
    return %arg0, %c0_i32 : i32, i32
  }
}

</mosaic_0001>

<llo_original>
// kernel: _lambda_.3
$region0: #{_lambda_.3}
  #allocation0 [shape = 'u32[]', space=smem, size = 0x4, offset = 0x4, fixed_abs, tag = 'smem constant byte address 0x4 - core index']
  #allocation1 [shape = 'u32[144,128]{1,0:T(1,128)}', space=vmem, size = 0x12000, scoped, tag = 'internal scratch']
  %s0 = inlined_call_operand.vmem [shape: bf16[512,36], index: 0, kind: input, shape index: {}]
  %s1 = inlined_call_operand.vmem [shape: bf16[36,8], index: 1, kind: input, shape index: {}]
  %s2 = inlined_call_operand.vmem [shape: bf16[512,8], index: 2, kind: output, shape index: {0}]
  %s3 = inlined_call_operand.vmem [shape: f32[4,2,8], index: 3, kind: output, shape index: {1}]
  %4 = xla_tuple %s2, %s3
  %s5 = sld [smem:[#allocation0]]
  $region49: #{_lambda_.3} parent=0
    _
  %s7 = ssub.s32 1, %s5
  %s8 = scalar_select 0, %s7, %s5
  loop: start=0, step=1, limit=6
  $region2: #{_lambda_.3} parent=0 // loop_pre_header
    _
  $region3: #{_lambda_.3} parent=0 // loop_header
    %s10 = sphi 0, %s14
    %p11 = scmp.ge.s32.totalorder %s10, 6
    %s20 = sphi 0, %s22
    %s23 = sphi 0, %s20
    %s24 = sphi 0, %s23
    %s40 = sphi 0, %s24
    %s44 = sphi 0, %s44
    %s46 = sphi 0, %s44
    %s47 = sphi 0, %s46
    %s61 = sphi 0, %s47
    %s67 = sphi 0, %s69
    %s70 = sphi 0, %s67
    %s71 = sphi 0, %s70
    %s87 = sphi 0, %s71
    %s93 = sphi 0, %s95
    %s96 = sphi 0, %s93
    %s97 = sphi 0, %s96
    %s113 = sphi 0, %s97
  $region4: #{_lambda_.3} parent=0 // loop_header_branch
    %13 = sbr.rel (%p11) target = $region8
  $region5: #{_lambda_.3} parent=0 // loop_body
    %s15 = ssub.s32 %s10, 1
    %s16 = ssub.s32 %s10, 2
    %s17 = sadd.s32 %s10, 1
    %s18 = ssub.s32 %s10, %s17
    %p19 = scmp.eq.s32.totalorder %s18, 0
    %s21 = sadd.s32 %s20, 1
    %s22 = scalar_select %p19, %s20, %s21
    %p25 = pneg %p19
    %p26 = scmp.eq.s32.totalorder %s10, 3
    %p27 = por %p25, %p26
    %p28 = scmp.ne.s32.totalorder %s20, %s23
    %p29 = scmp.eq.s32.totalorder %s10, 0
    %p30 = por %p28, %p29
    %p31 = scmp.ne.s32.totalorder %s20, %s23
    %p32 = scmp.eq.s32.totalorder %s15, 3
    %p33 = por %p31, %p32
    %p34 = scmp.ne.s32.totalorder %s23, %s24
    %p35 = scmp.eq.s32.totalorder %s15, 0
    %p36 = por %p34, %p35
    %p37 = scmp.ne.s32.totalorder %s23, %s24
    %p38 = scmp.eq.s32.totalorder %s16, 3
    %p39 = por %p37, %p38
    %p41 = scmp.ne.s32.totalorder %s24, %s40
    %p42 = scmp.eq.s32.totalorder %s16, 0
    %p43 = por %p41, %p42
    %s45 = sadd.s32 %s44, 1
    %p48 = scmp.eq.s32.totalorder %s10, 3
    %p49 = scmp.ne.s32.totalorder %s44, %s46
    %p50 = scmp.eq.s32.totalorder %s10, 0
    %p51 = por %p49, %p50
    %p52 = scmp.ne.s32.totalorder %s44, %s46
    %p53 = scmp.eq.s32.totalorder %s15, 3
    %p54 = por %p52, %p53
    %p55 = scmp.ne.s32.totalorder %s46, %s47
    %p56 = scmp.eq.s32.totalorder %s15, 0
    %p57 = por %p55, %p56
    %p58 = scmp.ne.s32.totalorder %s46, %s47
    %p59 = scmp.eq.s32.totalorder %s16, 3
    %p60 = por %p58, %p59
    %p62 = scmp.ne.s32.totalorder %s47, %s61
    %p63 = scmp.eq.s32.totalorder %s16, 0
    %p64 = por %p62, %p63
    %s65 = ssub.s32 %s10, %s17
    %p66 = scmp.eq.s32.totalorder %s65, 0
    %s68 = sadd.s32 %s67, 1
    %s69 = scalar_select %p66, %s67, %s68
    %p72 = pneg %p66
    %p73 = scmp.eq.s32.totalorder %s10, 3
    %p74 = por %p72, %p73
    %p75 = scmp.ne.s32.totalorder %s67, %s70
    %p76 = scmp.eq.s32.totalorder %s10, 0
    %p77 = por %p75, %p76
    %p78 = scmp.ne.s32.totalorder %s67, %s70
    %p79 = scmp.eq.s32.totalorder %s15, 3
    %p80 = por %p78, %p79
    %p81 = scmp.ne.s32.totalorder %s70, %s71
    %p82 = scmp.eq.s32.totalorder %s15, 0
    %p83 = por %p81, %p82
    %p84 = scmp.ne.s32.totalorder %s70, %s71
    %p85 = scmp.eq.s32.totalorder %s16, 3
    %p86 = por %p84, %p85
    %p88 = scmp.ne.s32.totalorder %s71, %s87
    %p89 = scmp.eq.s32.totalorder %s16, 0
    %p90 = por %p88, %p89
    %s91 = ssub.s32 %s10, %s17
    %p92 = scmp.eq.s32.totalorder %s91, 0
    %s94 = sadd.s32 %s93, 1
    %s95 = scalar_select %p92, %s93, %s94
    %p98 = pneg %p92
    %p99 = scmp.eq.s32.totalorder %s10, 3
    %p100 = por %p98, %p99
    %p101 = scmp.ne.s32.totalorder %s93, %s96
    %p102 = scmp.eq.s32.totalorder %s10, 0
    %p103 = por %p101, %p102
    %p104 = scmp.ne.s32.totalorder %s93, %s96
    %p105 = scmp.eq.s32.totalorder %s15, 3
    %p106 = por %p104, %p105
    %p107 = scmp.ne.s32.totalorder %s96, %s97
    %p108 = scmp.eq.s32.totalorder %s15, 0
    %p109 = por %p107, %p108
    %p110 = scmp.ne.s32.totalorder %s96, %s97
    %p111 = scmp.eq.s32.totalorder %s16, 3
    %p112 = por %p110, %p111
    %p114 = scmp.ne.s32.totalorder %s97, %s113
    %p115 = scmp.eq.s32.totalorder %s16, 0
    %p116 = por %p114, %p115
    %p117 = scmp.le.s32.totalorder 1, %s10
    %p118 = scmp.lt.s32.totalorder %s10, 5
    %p119 = pnand %p117, %p118
    %p120 = pneg %p119
    // Predicated region
    $region9: #{_lambda_.3} parent=5 // pred_check
      _
    $region10: #{_lambda_.3} parent=5 // pred_check_branch
      %122 = sbr.rel (%p119) target = $region12
    $region11: #{_lambda_.3} parent=5 // pred_region
      %s123 = ssub.s32 %s10, 1
      // Predicated region
      $region13: #{_lambda_.3} parent=11 // pred_check
        %p124 = pneg %p57
      $region14: #{_lambda_.3} parent=11 // pred_check_branch
        %126 = sbr.rel (%p124) target = $region16
      $region15: #{_lambda_.3} parent=11 // pred_region
        _
      $region16: #{_lambda_.3} parent=11 // pred_fallthru
        _
    $region12: #{_lambda_.3} parent=5 // pred_fallthru
      _
    %p127 = scmp.lt.s32.totalorder %s10, 4
    // Predicated region
    $region17: #{_lambda_.3} parent=5 // pred_check
      %p128 = pneg %p127
    $region18: #{_lambda_.3} parent=5 // pred_check_branch
      %130 = sbr.rel (%p128) target = $region20
    $region19: #{_lambda_.3} parent=5 // pred_region
      // Predicated region
      $region21: #{_lambda_.3} parent=19 // pred_check
        %p131 = pneg %p30
      $region22: #{_lambda_.3} parent=19 // pred_check_branch
        %133 = sbr.rel (%p131) target = $region24
      $region23: #{_lambda_.3} parent=19 // pred_region
        %s134 = smul.u32 16, %s10
        %p135 = scmp.lt.s32.totalorder %s134, 63
        %s136 = scalar_select %p135, %s134, 63
        %s137 = smul.addr %s136, 4
        %s138 = scalar_lea.vmem %s0, %s137
        %s139 = smul.u32 16, %s10
      $region24: #{_lambda_.3} parent=19 // pred_fallthru
        _
    $region20: #{_lambda_.3} parent=5 // pred_fallthru
      _
    %p140 = scmp.le.s32.totalorder 1, %s10
    %p141 = scmp.lt.s32.totalorder %s10, 5
    %p142 = pnand %p140, %p141
    %p143 = pneg %p142
    // Predicated region
    $region25: #{_lambda_.3} parent=5 // pred_check
      _
    $region26: #{_lambda_.3} parent=5 // pred_check_branch
      %145 = sbr.rel (%p142) target = $region28
    $region27: #{_lambda_.3} parent=5 // pred_region
      %s146 = ssub.s32 %s10, 1
      %s147 = smul.u32 16, %s15
      %p148 = scmp.lt.s32.totalorder %s147, 63
      %s149 = scalar_select %p148, %s147, 63
      %s150 = smul.addr %s149, 4
      %s151 = scalar_lea.vmem %s0, %s150
      %p152 = pneg %p36
      %p153 = pneg %p33
      %p154 = pneg %p57
      %p155 = pneg %p54
      %p156 = pneg %p83
      %p157 = pneg %p80
      %s158 = smul.u32 16, %s15
      %p159 = scmp.lt.s32.totalorder %s158, 63
      %s160 = scalar_select %p159, %s158, 63
      %s161 = smul.addr %s160, 4
      %s162 = scalar_lea.vmem %s2, %s161
      %p163 = pneg %p109
      %p164 = pneg %p106
      %p165 = scmp.lt.s32.totalorder %s15, 3
      %s166 = scalar_select %p165, %s15, 3
      %s167 = smul.addr %s166, 2
      %s168 = scalar_lea.vmem %s3, %s167
      %s169 = smul.u32 16, %s15
      %p170 = scmp.lt.s32.totalorder %s169, 63
      %s171 = scalar_select %p170, %s169, 63
      %s172 = smul.addr %s171, 4
      %s173 = scalar_lea.vmem %s0, %s172
      %s174 = smul.u32 16, %s15
      %s175 = smul.u32 16, %s15
      %p176 = scmp.lt.s32.totalorder %s175, 63
      %s177 = scalar_select %p176, %s175, 63
      %s178 = smul.addr %s177, 4
      %s179 = scalar_lea.vmem %s2, %s178
      %s180 = smul.u32 16, %s15
      %p181 = scmp.lt.s32.totalorder %s15, 3
      %s182 = scalar_select %p181, %s15, 3
      %s183 = smul.addr %s182, 2
      %s184 = scalar_lea.vmem %s3, %s183
      %v186 = vld [vmem:[%s173] sm:$0xf]
      %v187 = vld [vmem:[%s173 + $0x4] sm:$0xf]
      %v188 = vld [vmem:[%s173 + $0x8] sm:$0xf]
      %v189 = vld [vmem:[%s173 + $0xc] sm:$0xf]
      %v190 = vld [vmem:[%s173 + $0x10] sm:$0xf]
      %v191 = vld [vmem:[%s173 + $0x14] sm:$0xf]
      %v192 = vld [vmem:[%s173 + $0x18] sm:$0xf]
      %v193 = vld [vmem:[%s173 + $0x1c] sm:$0xf]
      %v194 = vld [vmem:[%s173 + $0x20] sm:$0xf]
      %v195 = vld [vmem:[%s173 + $0x24] sm:$0xf]
      %v196 = vld [vmem:[%s173 + $0x28] sm:$0xf]
      %v197 = vld [vmem:[%s173 + $0x2c] sm:$0xf]
      %v198 = vld [vmem:[%s173 + $0x30] sm:$0xf]
      %v199 = vld [vmem:[%s173 + $0x34] sm:$0xf]
      %v200 = vld [vmem:[%s173 + $0x38] sm:$0xf]
      %v201 = vld [vmem:[%s173 + $0x3c] sm:$0xf]
      %v202 = vld [vmem:[%s1] sm:$0xf]
      %v203 = vld [vmem:[%s1 + $0x4] sm:$0xf]
      %v204 = vld [vmem:[%s1 + $0x8] sm:$0xf]
      %v205 = vld [vmem:[%s1 + $0xc] sm:$0xf]
      %v206 = vld [vmem:[%s1 + $0x10] sm:$0x3]
      %v223 = vunpack.c.l.b16 %v186
      %v224 = vunpack.c.l.b16 %v187
      %v225 = vunpack.c.l.b16 %v188
      %v226 = vunpack.c.l.b16 %v189
      %v227 = vunpack.c.l.b16 %v190
      %v228 = vunpack.c.l.b16 %v191
      %v229 = vunpack.c.l.b16 %v192
      %v230 = vunpack.c.l.b16 %v193
      %v231 = vunpack.c.l.b16 %v194
      %v232 = vunpack.c.l.b16 %v195
      %v233 = vunpack.c.l.b16 %v196
      %v234 = vunpack.c.l.b16 %v197
      %v235 = vunpack.c.l.b16 %v198
      %v236 = vunpack.c.l.b16 %v199
      %v237 = vunpack.c.l.b16 %v200
      %v238 = vunpack.c.l.b16 %v201
      %v239 = vpack.c.b16 %v224, %v223
      %v240 = vpack.c.b16 %v226, %v225
      %v241 = vpack.c.b16 %v228, %v227
      %v242 = vpack.c.b16 %v230, %v229
      %v243 = vpack.c.b16 %v232, %v231
      %v244 = vpack.c.b16 %v234, %v233
      %v245 = vpack.c.b16 %v236, %v235
      %v246 = vpack.c.b16 %v238, %v237
      %v252 = vunpack.c.l.b16 %v202
      %v253 = vunpack.c.l.b16 %v203
      %v254 = vunpack.c.l.b16 %v204
      %v255 = vunpack.c.l.b16 %v205
      %v256 = vunpack.c.l.b16 %v206
      %v257 = vpack.c.b16 %v253, %v252
      %v258 = vpack.c.b16 %v255, %v254
      %v259 = vpack.c.b16 %v256, %v256
      %vm262 = vcmask 293888
      %v264 = vsel %vm262, %v239, 0
      %v267 = vsel %vm262, %v240, 0
      %v270 = vsel %vm262, %v241, 0
      %v273 = vsel %vm262, %v242, 0
      %v276 = vsel %vm262, %v243, 0
      %v279 = vsel %vm262, %v244, 0
      %v282 = vsel %vm262, %v245, 0
      %v285 = vsel %vm262, %v246, 0
      %vm287 = vcmask 1041408
      %v289 = vsel %vm287, %v259, 0
      %291 = vmatprep.subr.bf16.mxu0 0
      %292 = vmatpush1.bf16.msra.mxu0 %v257
      %293 = vmatprep.subr.bf16.mxu0 0
      %294 = vmatpush1.bf16.msra.mxu0 %v258
      %295 = vmatprep.subr.bf16.mxu0 0
      %296 = vmatpush1.bf16.msra.mxu0 %v289
      %297 = vmatprep.subr.bf16.mxu0 0
      %298 = vmatpush1.bf16.msra.mxu0 0
      %299 = vmatprep.subr.bf16.mxu0 0
      %300 = vmatpush1.bf16.msra.mxu0 0
      %301 = vmatprep.subr.bf16.mxu0 0
      %302 = vmatpush1.bf16.msra.mxu0 0
      %303 = vmatprep.subr.bf16.mxu0 0
      %304 = vmatpush1.bf16.msra.mxu0 0
      %305 = vmatprep.subr.bf16.mxu0 0
      %306 = vmatpush1.bf16.msra.mxu0 0
      %307 = vmatprep.subr.bf16.mxu0 0
      %308 = vmatpush1.bf16.msra.mxu0 0
      %309 = vmatprep.subr.bf16.mxu0 0
      %310 = vmatpush1.bf16.msra.mxu0 0
      %311 = vmatprep.subr.bf16.mxu0 0
      %312 = vmatpush1.bf16.msra.mxu0 0
      %313 = vmatprep.subr.bf16.mxu0 0
      %314 = vmatpush1.bf16.msra.mxu0 0
      %315 = vmatprep.subr.bf16.mxu0 0
      %316 = vmatpush1.bf16.msra.mxu0 0
      %317 = vmatprep.subr.bf16.mxu0 0
      %318 = vmatpush1.bf16.msra.mxu0 0
      %319 = vmatprep.subr.bf16.mxu0 0
      %320 = vmatpush1.bf16.msra.mxu0 0
      %321 = vmatprep.subr.bf16.mxu0 0
      %322 = vmatpush1.bf16.msra.mxu0 0
      %323 = vmatprep.mubr.bf16.mxu0 0
      %324 = vmatmul.mubr.bf16.gmra.mrb[0].mxu0 %v264
      %v325 = vpop.f32.mrb[0].mxu0
      %v326 = vadd.f32 0.0, %v325
      %v327 = vpop.f32.mrb[0].mxu0
      %v328 = vpop.f32.mrb[0].mxu0
      %v329 = vadd.f32 0.0, %v328
      %v330 = vpop.f32.mrb[0].mxu0
      %331 = vmatprep.mubr.bf16.mxu0 0
      %332 = vmatmul.mubr.bf16.gmra.mrb[0].mxu0 %v267
      %v333 = vpop.f32.mrb[0].mxu0
      %v334 = vadd.f32 0.0, %v333
      %v335 = vpop.f32.mrb[0].mxu0
      %v336 = vpop.f32.mrb[0].mxu0
      %v337 = vadd.f32 0.0, %v336
      %v338 = vpop.f32.mrb[0].mxu0
      %339 = vmatprep.mubr.bf16.mxu0 0
      %340 = vmatmul.mubr.bf16.gmra.mrb[0].mxu0 %v270
      %v341 = vpop.f32.mrb[0].mxu0
      %v342 = vadd.f32 0.0, %v341
      %v343 = vpop.f32.mrb[0].mxu0
      %v344 = vpop.f32.mrb[0].mxu0
      %v345 = vadd.f32 0.0, %v344
      %v346 = vpop.f32.mrb[0].mxu0
      %347 = vmatprep.mubr.bf16.mxu0 0
      %348 = vmatmul.mubr.bf16.gmra.mrb[0].mxu0 %v273
      %v349 = vpop.f32.mrb[0].mxu0
      %v350 = vadd.f32 0.0, %v349
      %v351 = vpop.f32.mrb[0].mxu0
      %v352 = vpop.f32.mrb[0].mxu0
      %v353 = vadd.f32 0.0, %v352
      %v354 = vpop.f32.mrb[0].mxu0
      %355 = vmatprep.mubr.bf16.mxu0 0
      %356 = vmatmul.mubr.bf16.gmra.mrb[0].mxu0 %v276
      %v357 = vpop.f32.mrb[0].mxu0
      %v358 = vadd.f32 0.0, %v357
      %v359 = vpop.f32.mrb[0].mxu0
      %v360 = vpop.f32.mrb[0].mxu0
      %v361 = vadd.f32 0.0, %v360
      %v362 = vpop.f32.mrb[0].mxu0
      %363 = vmatprep.mubr.bf16.mxu0 0
      %364 = vmatmul.mubr.bf16.gmra.mrb[0].mxu0 %v279
      %v365 = vpop.f32.mrb[0].mxu0
      %v366 = vadd.f32 0.0, %v365
      %v367 = vpop.f32.mrb[0].mxu0
      %v368 = vpop.f32.mrb[0].mxu0
      %v369 = vadd.f32 0.0, %v368
      %v370 = vpop.f32.mrb[0].mxu0
      %371 = vmatprep.mubr.bf16.mxu0 0
      %372 = vmatmul.mubr.bf16.gmra.mrb[0].mxu0 %v282
      %v373 = vpop.f32.mrb[0].mxu0
      %v374 = vadd.f32 0.0, %v373
      %v375 = vpop.f32.mrb[0].mxu0
      %v376 = vpop.f32.mrb[0].mxu0
      %v377 = vadd.f32 0.0, %v376
      %v378 = vpop.f32.mrb[0].mxu0
      %379 = vmatprep.mubr.bf16.mxu0 0
      %380 = vmatmul.mubr.bf16.gmra.mrb[0].mxu0 %v285
      %v381 = vpop.f32.mrb[0].mxu0
      %v382 = vadd.f32 0.0, %v381
      %v383 = vpop.f32.mrb[0].mxu0
      %v384 = vpop.f32.mrb[0].mxu0
      %v385 = vadd.f32 0.0, %v384
      %v386 = vpop.f32.mrb[0].mxu0
      %387 = vdwg.mxu0
      %v388 = vmax.f32 %v326, 0.0
      %v389 = vmax.f32 %v329, 0.0
      %v390 = vmax.f32 %v334, 0.0
      %v391 = vmax.f32 %v337, 0.0
      %v392 = vmax.f32 %v342, 0.0
      %v393 = vmax.f32 %v345, 0.0
      %v394 = vmax.f32 %v350, 0.0
      %v395 = vmax.f32 %v353, 0.0
      %v396 = vmax.f32 %v358, 0.0
      %v397 = vmax.f32 %v361, 0.0
      %v398 = vmax.f32 %v366, 0.0
      %v399 = vmax.f32 %v369, 0.0
      %v400 = vmax.f32 %v374, 0.0
      %v401 = vmax.f32 %v377, 0.0
      %v402 = vmax.f32 %v382, 0.0
      %v403 = vmax.f32 %v385, 0.0
      %vm404 = vcmask 64512
      %v405 = vsel %vm404, %v388, 0.0
      %v406 = vsel %vm404, %v389, 0.0
      %v407 = vadd.f32 %v405, %v406
      %v408 = vsel %vm404, %v390, 0.0
      %v409 = vadd.f32 %v407, %v408
      %v410 = vsel %vm404, %v391, 0.0
      %v411 = vadd.f32 %v409, %v410
      %v412 = vsel %vm404, %v392, 0.0
      %v413 = vadd.f32 %v411, %v412
      %v414 = vsel %vm404, %v393, 0.0
      %v415 = vadd.f32 %v413, %v414
      %v416 = vsel %vm404, %v394, 0.0
      %v417 = vadd.f32 %v415, %v416
      %v418 = vsel %vm404, %v395, 0.0
      %v419 = vadd.f32 %v417, %v418
      %v420 = vsel %vm404, %v396, 0.0
      %v421 = vadd.f32 %v419, %v420
      %v422 = vsel %vm404, %v397, 0.0
      %v423 = vadd.f32 %v421, %v422
      %v424 = vsel %vm404, %v398, 0.0
      %v425 = vadd.f32 %v423, %v424
      %v426 = vsel %vm404, %v399, 0.0
      %v427 = vadd.f32 %v425, %v426
      %v428 = vsel %vm404, %v400, 0.0
      %v429 = vadd.f32 %v427, %v428
      %v430 = vsel %vm404, %v401, 0.0
      %v431 = vadd.f32 %v429, %v430
      %v432 = vsel %vm404, %v402, 0.0
      %v433 = vadd.f32 %v431, %v432
      %v434 = vsel %vm404, %v403, 0.0
      %v435 = vadd.f32 %v433, %v434
      %v436 = vrot.slane %v435, 4
      %v437 = vadd.f32 %v435, %v436
      %v438 = vrot.slane %v437, 2
      %v439 = vadd.f32 %v437, %v438
      %v440 = vrot.slane %v439, 1
      %v441 = vadd.f32 %v439, %v440
      %v442 = vmul.f32 %v388, %v388
      %v443 = vmul.f32 %v389, %v389
      %v444 = vmul.f32 %v390, %v390
      %v445 = vmul.f32 %v391, %v391
      %v446 = vmul.f32 %v392, %v392
      %v447 = vmul.f32 %v393, %v393
      %v448 = vmul.f32 %v394, %v394
      %v449 = vmul.f32 %v395, %v395
      %v450 = vmul.f32 %v396, %v396
      %v451 = vmul.f32 %v397, %v397
      %v452 = vmul.f32 %v398, %v398
      %v453 = vmul.f32 %v399, %v399
      %v454 = vmul.f32 %v400, %v400
      %v455 = vmul.f32 %v401, %v401
      %v456 = vmul.f32 %v402, %v402
      %v457 = vmul.f32 %v403, %v403
      %v458 = vsel %vm404, %v442, 0.0
      %v459 = vsel %vm404, %v443, 0.0
      %v460 = vadd.f32 %v458, %v459
      %v461 = vsel %vm404, %v444, 0.0
      %v462 = vadd.f32 %v460, %v461
      %v463 = vsel %vm404, %v445, 0.0
      %v464 = vadd.f32 %v462, %v463
      %v465 = vsel %vm404, %v446, 0.0
      %v466 = vadd.f32 %v464, %v465
      %v467 = vsel %vm404, %v447, 0.0
      %v468 = vadd.f32 %v466, %v467
      %v469 = vsel %vm404, %v448, 0.0
      %v470 = vadd.f32 %v468, %v469
      %v471 = vsel %vm404, %v449, 0.0
      %v472 = vadd.f32 %v470, %v471
      %v473 = vsel %vm404, %v450, 0.0
      %v474 = vadd.f32 %v472, %v473
      %v475 = vsel %vm404, %v451, 0.0
      %v476 = vadd.f32 %v474, %v475
      %v477 = vsel %vm404, %v452, 0.0
      %v478 = vadd.f32 %v476, %v477
      %v479 = vsel %vm404, %v453, 0.0
      %v480 = vadd.f32 %v478, %v479
      %v481 = vsel %vm404, %v454, 0.0
      %v482 = vadd.f32 %v480, %v481
      %v483 = vsel %vm404, %v455, 0.0
      %v484 = vadd.f32 %v482, %v483
      %v485 = vsel %vm404, %v456, 0.0
      %v486 = vadd.f32 %v484, %v485
      %v487 = vsel %vm404, %v457, 0.0
      %v488 = vadd.f32 %v486, %v487
      %v489 = vrot.slane %v488, 4
      %v490 = vadd.f32 %v488, %v489
      %v491 = vrot.slane %v490, 2
      %v492 = vadd.f32 %v490, %v491
      %v493 = vrot.slane %v492, 1
      %v494 = vadd.f32 %v492, %v493
      %vm495 = vcmask 1040384
      %v496 = vsel %vm495, %v441, %v494
      %vm497 = vcmask 58368
      %498 = vst.msk [vmem:[%s184] sm:$0x3] %vm497, %v496
      %v499 = vpack.c.bf16 %v389, %v388
      %v500 = vpack.c.bf16 %v391, %v390
      %v501 = vpack.c.bf16 %v393, %v392
      %v502 = vpack.c.bf16 %v395, %v394
      %v503 = vpack.c.bf16 %v397, %v396
      %v504 = vpack.c.bf16 %v399, %v398
      %v505 = vpack.c.bf16 %v401, %v400
      %v506 = vpack.c.bf16 %v403, %v402
      %v515 = vunpack.c.l.b16 %v499
      %v516 = vunpack.c.h.b16 %v499
      %v517 = vunpack.c.l.b16 %v500
      %v518 = vunpack.c.h.b16 %v500
      %v519 = vunpack.c.l.b16 %v501
      %v520 = vunpack.c.h.b16 %v501
      %v521 = vunpack.c.l.b16 %v502
      %v522 = vunpack.c.h.b16 %v502
      %v523 = vunpack.c.l.b16 %v503
      %v524 = vunpack.c.h.b16 %v503
      %v525 = vunpack.c.l.b16 %v504
      %v526 = vunpack.c.h.b16 %v504
      %v527 = vunpack.c.l.b16 %v505
      %v528 = vunpack.c.h.b16 %v505
      %v529 = vunpack.c.l.b16 %v506
      %v530 = vunpack.c.h.b16 %v506
      %v531 = vpack.c.b16 %v515, %v515
      %v532 = vpack.c.b16 %v516, %v516
      %v533 = vpack.c.b16 %v517, %v517
      %v534 = vpack.c.b16 %v518, %v518
      %v535 = vpack.c.b16 %v519, %v519
      %v536 = vpack.c.b16 %v520, %v520
      %v537 = vpack.c.b16 %v521, %v521
      %v538 = vpack.c.b16 %v522, %v522
      %v539 = vpack.c.b16 %v523, %v523
      %v540 = vpack.c.b16 %v524, %v524
      %v541 = vpack.c.b16 %v525, %v525
      %v542 = vpack.c.b16 %v526, %v526
      %v543 = vpack.c.b16 %v527, %v527
      %v544 = vpack.c.b16 %v528, %v528
      %v545 = vpack.c.b16 %v529, %v529
      %v546 = vpack.c.b16 %v530, %v530
      %vm563 = vcmask 60416
      %564 = vst.msk [vmem:[%s179] sm:$0xf] %vm563, %v531
      %565 = vst.msk [vmem:[%s179 + $0x4] sm:$0xf] %vm563, %v532
      %566 = vst.msk [vmem:[%s179 + $0x8] sm:$0xf] %vm563, %v533
      %567 = vst.msk [vmem:[%s179 + $0xc] sm:$0xf] %vm563, %v534
      %568 = vst.msk [vmem:[%s179 + $0x10] sm:$0xf] %vm563, %v535
      %569 = vst.msk [vmem:[%s179 + $0x14] sm:$0xf] %vm563, %v536
      %570 = vst.msk [vmem:[%s179 + $0x18] sm:$0xf] %vm563, %v537
      %571 = vst.msk [vmem:[%s179 + $0x1c] sm:$0xf] %vm563, %v538
      %572 = vst.msk [vmem:[%s179 + $0x20] sm:$0xf] %vm563, %v539
      %573 = vst.msk [vmem:[%s179 + $0x24] sm:$0xf] %vm563, %v540
      %574 = vst.msk [vmem:[%s179 + $0x28] sm:$0xf] %vm563, %v541
      %575 = vst.msk [vmem:[%s179 + $0x2c] sm:$0xf] %vm563, %v542
      %576 = vst.msk [vmem:[%s179 + $0x30] sm:$0xf] %vm563, %v543
      %577 = vst.msk [vmem:[%s179 + $0x34] sm:$0xf] %vm563, %v544
      %578 = vst.msk [vmem:[%s179 + $0x38] sm:$0xf] %vm563, %v545
      %579 = vst.msk [vmem:[%s179 + $0x3c] sm:$0xf] %vm563, %v546
      %s580 = smul.u32 16, %s15
      %p581 = scmp.lt.s32.totalorder %s580, 63
      %s582 = scalar_select %p581, %s580, 63
      %s583 = smul.addr %s582, 4
      %s584 = scalar_lea.vmem %s2, %s583
      %p585 = scmp.lt.s32.totalorder %s15, 3
      %s586 = scalar_select %p585, %s15, 3
      %s587 = smul.addr %s586, 2
      %s588 = scalar_lea.vmem %s3, %s587
      // Predicated region
      $region29: #{_lambda_.3} parent=27 // pred_check
        %p589 = pneg %p80
      $region30: #{_lambda_.3} parent=27 // pred_check_branch
        %591 = sbr.rel (%p589) target = $region32
      $region31: #{_lambda_.3} parent=27 // pred_region
        %s592 = smul.u32 16, %s15
      $region32: #{_lambda_.3} parent=27 // pred_fallthru
        _
      // Predicated region
      $region33: #{_lambda_.3} parent=27 // pred_check
        %p593 = pneg %p106
      $region34: #{_lambda_.3} parent=27 // pred_check_branch
        %595 = sbr.rel (%p593) target = $region36
      $region35: #{_lambda_.3} parent=27 // pred_region
        _
      $region36: #{_lambda_.3} parent=27 // pred_fallthru
        _
    $region28: #{_lambda_.3} parent=5 // pred_fallthru
      _
    %p596 = scmp.le.s32.totalorder 2, %s10
    // Predicated region
    $region37: #{_lambda_.3} parent=5 // pred_check
      %p597 = pneg %p596
    $region38: #{_lambda_.3} parent=5 // pred_check_branch
      %599 = sbr.rel (%p597) target = $region40
    $region39: #{_lambda_.3} parent=5 // pred_region
      %s600 = ssub.s32 %s10, 2
      // Predicated region
      $region41: #{_lambda_.3} parent=39 // pred_check
        %p601 = pneg %p86
      $region42: #{_lambda_.3} parent=39 // pred_check_branch
        %603 = sbr.rel (%p601) target = $region44
      $region43: #{_lambda_.3} parent=39 // pred_region
        %s604 = smul.u32 16, %s16
        %p605 = scmp.lt.s32.totalorder %s604, 63
        %s606 = scalar_select %p605, %s604, 63
        %s607 = smul.addr %s606, 4
        %s608 = scalar_lea.vmem %s2, %s607
      $region44: #{_lambda_.3} parent=39 // pred_fallthru
        _
      // Predicated region
      $region45: #{_lambda_.3} parent=39 // pred_check
        %p609 = pneg %p112
      $region46: #{_lambda_.3} parent=39 // pred_check_branch
        %611 = sbr.rel (%p609) target = $region48
      $region47: #{_lambda_.3} parent=39 // pred_region
        %p612 = scmp.lt.s32.totalorder %s16, 3
        %s613 = scalar_select %p612, %s16, 3
        %s614 = smul.addr %s613, 2
        %s615 = scalar_lea.vmem %s3, %s614
      $region48: #{_lambda_.3} parent=39 // pred_fallthru
        _
    $region40: #{_lambda_.3} parent=5 // pred_fallthru
      _
  $region6: #{_lambda_.3} parent=0 // loop_footer
    %s14 = sadd.s32 1, %s10
  $region7: #{_lambda_.3} parent=0 // loop_footer_branch
    %9 = sbr.rel target = $region3
  $region8: #{_lambda_.3} parent=0 // loop_exit
    _

// kernel: _lambda_.4
$region0: #{_lambda_.4}
  #allocation0 [shape = 'u32[]', space=smem, size = 0x4, offset = 0x4, fixed_abs, tag = 'smem constant byte address 0x4 - core index']
  #allocation1 [shape = 'u32[144,128]{1,0:T(1,128)}', space=vmem, size = 0x12000, scoped, tag = 'internal scratch']
  %s0 = inlined_call_operand.vmem [shape: bf16[512,72], index: 0, kind: input, shape index: {}]
  %s1 = inlined_call_operand.vmem [shape: bf16[72,4], index: 1, kind: input, shape index: {}]
  %s2 = inlined_call_operand.vmem [shape: bf16[512,4], index: 2, kind: input, shape index: {}]
  %s3 = inlined_call_operand.vmem [shape: bf16[512,4], index: 3, kind: output, shape index: {0}]
  %s4 = inlined_call_operand.vmem [shape: f32[4,2,4], index: 4, kind: output, shape index: {1}]
  %5 = xla_tuple %s3, %s4
  %s6 = sld [smem:[#allocation0]]
  $region53: #{_lambda_.4} parent=0
    _
  %s8 = ssub.s32 1, %s6
  %s9 = scalar_select 0, %s8, %s6
  loop: start=0, step=1, limit=6
  $region2: #{_lambda_.4} parent=0 // loop_pre_header
    _
  $region3: #{_lambda_.4} parent=0 // loop_header
    %s11 = sphi 0, %s15
    %p12 = scmp.ge.s32.totalorder %s11, 6
    %s21 = sphi 0, %s23
    %s24 = sphi 0, %s21
    %s25 = sphi 0, %s24
    %s41 = sphi 0, %s25
    %s45 = sphi 0, %s45
    %s47 = sphi 0, %s45
    %s48 = sphi 0, %s47
    %s62 = sphi 0, %s48
    %s68 = sphi 0, %s70
    %s71 = sphi 0, %s68
    %s72 = sphi 0, %s71
    %s88 = sphi 0, %s72
    %s94 = sphi 0, %s96
    %s97 = sphi 0, %s94
    %s98 = sphi 0, %s97
    %s114 = sphi 0, %s98
    %s120 = sphi 0, %s122
    %s123 = sphi 0, %s120
    %s124 = sphi 0, %s123
    %s140 = sphi 0, %s124
  $region4: #{_lambda_.4} parent=0 // loop_header_branch
    %14 = sbr.rel (%p12) target = $region8
  $region5: #{_lambda_.4} parent=0 // loop_body
    %s16 = ssub.s32 %s11, 1
    %s17 = ssub.s32 %s11, 2
    %s18 = sadd.s32 %s11, 1
    %s19 = ssub.s32 %s11, %s18
    %p20 = scmp.eq.s32.totalorder %s19, 0
    %s22 = sadd.s32 %s21, 1
    %s23 = scalar_select %p20, %s21, %s22
    %p26 = pneg %p20
    %p27 = scmp.eq.s32.totalorder %s11, 3
    %p28 = por %p26, %p27
    %p29 = scmp.ne.s32.totalorder %s21, %s24
    %p30 = scmp.eq.s32.totalorder %s11, 0
    %p31 = por %p29, %p30
    %p32 = scmp.ne.s32.totalorder %s21, %s24
    %p33 = scmp.eq.s32.totalorder %s16, 3
    %p34 = por %p32, %p33
    %p35 = scmp.ne.s32.totalorder %s24, %s25
    %p36 = scmp.eq.s32.totalorder %s16, 0
    %p37 = por %p35, %p36
    %p38 = scmp.ne.s32.totalorder %s24, %s25
    %p39 = scmp.eq.s32.totalorder %s17, 3
    %p40 = por %p38, %p39
    %p42 = scmp.ne.s32.totalorder %s25, %s41
    %p43 = scmp.eq.s32.totalorder %s17, 0
    %p44 = por %p42, %p43
    %s46 = sadd.s32 %s45, 1
    %p49 = scmp.eq.s32.totalorder %s11, 3
    %p50 = scmp.ne.s32.totalorder %s45, %s47
    %p51 = scmp.eq.s32.totalorder %s11, 0
    %p52 = por %p50, %p51
    %p53 = scmp.ne.s32.totalorder %s45, %s47
    %p54 = scmp.eq.s32.totalorder %s16, 3
    %p55 = por %p53, %p54
    %p56 = scmp.ne.s32.totalorder %s47, %s48
    %p57 = scmp.eq.s32.totalorder %s16, 0
    %p58 = por %p56, %p57
    %p59 = scmp.ne.s32.totalorder %s47, %s48
    %p60 = scmp.eq.s32.totalorder %s17, 3
    %p61 = por %p59, %p60
    %p63 = scmp.ne.s32.totalorder %s48, %s62
    %p64 = scmp.eq.s32.totalorder %s17, 0
    %p65 = por %p63, %p64
    %s66 = ssub.s32 %s11, %s18
    %p67 = scmp.eq.s32.totalorder %s66, 0
    %s69 = sadd.s32 %s68, 1
    %s70 = scalar_select %p67, %s68, %s69
    %p73 = pneg %p67
    %p74 = scmp.eq.s32.totalorder %s11, 3
    %p75 = por %p73, %p74
    %p76 = scmp.ne.s32.totalorder %s68, %s71
    %p77 = scmp.eq.s32.totalorder %s11, 0
    %p78 = por %p76, %p77
    %p79 = scmp.ne.s32.totalorder %s68, %s71
    %p80 = scmp.eq.s32.totalorder %s16, 3
    %p81 = por %p79, %p80
    %p82 = scmp.ne.s32.totalorder %s71, %s72
    %p83 = scmp.eq.s32.totalorder %s16, 0
    %p84 = por %p82, %p83
    %p85 = scmp.ne.s32.totalorder %s71, %s72
    %p86 = scmp.eq.s32.totalorder %s17, 3
    %p87 = por %p85, %p86
    %p89 = scmp.ne.s32.totalorder %s72, %s88
    %p90 = scmp.eq.s32.totalorder %s17, 0
    %p91 = por %p89, %p90
    %s92 = ssub.s32 %s11, %s18
    %p93 = scmp.eq.s32.totalorder %s92, 0
    %s95 = sadd.s32 %s94, 1
    %s96 = scalar_select %p93, %s94, %s95
    %p99 = pneg %p93
    %p100 = scmp.eq.s32.totalorder %s11, 3
    %p101 = por %p99, %p100
    %p102 = scmp.ne.s32.totalorder %s94, %s97
    %p103 = scmp.eq.s32.totalorder %s11, 0
    %p104 = por %p102, %p103
    %p105 = scmp.ne.s32.totalorder %s94, %s97
    %p106 = scmp.eq.s32.totalorder %s16, 3
    %p107 = por %p105, %p106
    %p108 = scmp.ne.s32.totalorder %s97, %s98
    %p109 = scmp.eq.s32.totalorder %s16, 0
    %p110 = por %p108, %p109
    %p111 = scmp.ne.s32.totalorder %s97, %s98
    %p112 = scmp.eq.s32.totalorder %s17, 3
    %p113 = por %p111, %p112
    %p115 = scmp.ne.s32.totalorder %s98, %s114
    %p116 = scmp.eq.s32.totalorder %s17, 0
    %p117 = por %p115, %p116
    %s118 = ssub.s32 %s11, %s18
    %p119 = scmp.eq.s32.totalorder %s118, 0
    %s121 = sadd.s32 %s120, 1
    %s122 = scalar_select %p119, %s120, %s121
    %p125 = pneg %p119
    %p126 = scmp.eq.s32.totalorder %s11, 3
    %p127 = por %p125, %p126
    %p128 = scmp.ne.s32.totalorder %s120, %s123
    %p129 = scmp.eq.s32.totalorder %s11, 0
    %p130 = por %p128, %p129
    %p131 = scmp.ne.s32.totalorder %s120, %s123
    %p132 = scmp.eq.s32.totalorder %s16, 3
    %p133 = por %p131, %p132
    %p134 = scmp.ne.s32.totalorder %s123, %s124
    %p135 = scmp.eq.s32.totalorder %s16, 0
    %p136 = por %p134, %p135
    %p137 = scmp.ne.s32.totalorder %s123, %s124
    %p138 = scmp.eq.s32.totalorder %s17, 3
    %p139 = por %p137, %p138
    %p141 = scmp.ne.s32.totalorder %s124, %s140
    %p142 = scmp.eq.s32.totalorder %s17, 0
    %p143 = por %p141, %p142
    %p144 = scmp.le.s32.totalorder 1, %s11
    %p145 = scmp.lt.s32.totalorder %s11, 5
    %p146 = pnand %p144, %p145
    %p147 = pneg %p146
    // Predicated region
    $region9: #{_lambda_.4} parent=5 // pred_check
      _
    $region10: #{_lambda_.4} parent=5 // pred_check_branch
      %149 = sbr.rel (%p146) target = $region12
    $region11: #{_lambda_.4} parent=5 // pred_region
      %s150 = ssub.s32 %s11, 1
      // Predicated region
      $region13: #{_lambda_.4} parent=11 // pred_check
        %p151 = pneg %p58
      $region14: #{_lambda_.4} parent=11 // pred_check_branch
        %153 = sbr.rel (%p151) target = $region16
      $region15: #{_lambda_.4} parent=11 // pred_region
        _
      $region16: #{_lambda_.4} parent=11 // pred_fallthru
        _
    $region12: #{_lambda_.4} parent=5 // pred_fallthru
      _
    %p154 = scmp.lt.s32.totalorder %s11, 4
    // Predicated region
    $region17: #{_lambda_.4} parent=5 // pred_check
      %p155 = pneg %p154
    $region18: #{_lambda_.4} parent=5 // pred_check_branch
      %157 = sbr.rel (%p155) target = $region20
    $region19: #{_lambda_.4} parent=5 // pred_region
      // Predicated region
      $region21: #{_lambda_.4} parent=19 // pred_check
        %p158 = pneg %p31
      $region22: #{_lambda_.4} parent=19 // pred_check_branch
        %160 = sbr.rel (%p158) target = $region24
      $region23: #{_lambda_.4} parent=19 // pred_region
        %s161 = smul.u32 16, %s11
        %p162 = scmp.lt.s32.totalorder %s161, 63
        %s163 = scalar_select %p162, %s161, 63
        %s164 = smul.addr %s163, 4
        %s165 = scalar_lea.vmem %s0, %s164
        %s166 = smul.u32 16, %s11
      $region24: #{_lambda_.4} parent=19 // pred_fallthru
        _
      // Predicated region
      $region25: #{_lambda_.4} parent=19 // pred_check
        %p167 = pneg %p78
      $region26: #{_lambda_.4} parent=19 // pred_check_branch
        %169 = sbr.rel (%p167) target = $region28
      $region27: #{_lambda_.4} parent=19 // pred_region
        %s170 = smul.u32 16, %s11
        %p171 = scmp.lt.s32.totalorder %s170, 63
        %s172 = scalar_select %p171, %s170, 63
        %s173 = smul.addr %s172, 4
        %s174 = scalar_lea.vmem %s2, %s173
        %s175 = smul.u32 16, %s11
      $region28: #{_lambda_.4} parent=19 // pred_fallthru
        _
    $region20: #{_lambda_.4} parent=5 // pred_fallthru
      _
    %p176 = scmp.le.s32.totalorder 1, %s11
    %p177 = scmp.lt.s32.totalorder %s11, 5
    %p178 = pnand %p176, %p177
    %p179 = pneg %p178
    // Predicated region
    $region29: #{_lambda_.4} parent=5 // pred_check
      _
    $region30: #{_lambda_.4} parent=5 // pred_check_branch
      %181 = sbr.rel (%p178) target = $region32
    $region31: #{_lambda_.4} parent=5 // pred_region
      %s182 = ssub.s32 %s11, 1
      %s183 = smul.u32 16, %s16
      %p184 = scmp.lt.s32.totalorder %s183, 63
      %s185 = scalar_select %p184, %s183, 63
      %s186 = smul.addr %s185, 4
      %s187 = scalar_lea.vmem %s0, %s186
      %p188 = pneg %p37
      %p189 = pneg %p34
      %p190 = pneg %p58
      %p191 = pneg %p55
      %s192 = smul.u32 16, %s16
      %p193 = scmp.lt.s32.totalorder %s192, 63
      %s194 = scalar_select %p193, %s192, 63
      %s195 = smul.addr %s194, 4
      %s196 = scalar_lea.vmem %s2, %s195
      %p197 = pneg %p84
      %p198 = pneg %p81
      %p199 = pneg %p110
      %p200 = pneg %p107
      %s201 = smul.u32 16, %s16
      %p202 = scmp.lt.s32.totalorder %s201, 63
      %s203 = scalar_select %p202, %s201, 63
      %s204 = smul.addr %s203, 4
      %s205 = scalar_lea.vmem %s3, %s204
      %p206 = pneg %p136
      %p207 = pneg %p133
      %p208 = scmp.lt.s32.totalorder %s16, 3
      %s209 = scalar_select %p208, %s16, 3
      %s210 = smul.addr %s209, 2
      %s211 = scalar_lea.vmem %s4, %s210
      %s212 = smul.u32 16, %s16
      %p213 = scmp.lt.s32.totalorder %s212, 63
      %s214 = scalar_select %p213, %s212, 63
      %s215 = smul.addr %s214, 4
      %s216 = scalar_lea.vmem %s0, %s215
      %s217 = smul.u32 16, %s16
      %s218 = smul.u32 16, %s16
      %p219 = scmp.lt.s32.totalorder %s218, 63
      %s220 = scalar_select %p219, %s218, 63
      %s221 = smul.addr %s220, 4
      %s222 = scalar_lea.vmem %s2, %s221
      %s223 = smul.u32 16, %s16
      %s224 = smul.u32 16, %s16
      %p225 = scmp.lt.s32.totalorder %s224, 63
      %s226 = scalar_select %p225, %s224, 63
      %s227 = smul.addr %s226, 4
      %s228 = scalar_lea.vmem %s3, %s227
      %s229 = smul.u32 16, %s16
      %p230 = scmp.lt.s32.totalorder %s16, 3
      %s231 = scalar_select %p230, %s16, 3
      %s232 = smul.addr %s231, 2
      %s233 = scalar_lea.vmem %s4, %s232
      %v235 = vld [vmem:[%s216] sm:$0xf]
      %v236 = vld [vmem:[%s216 + $0x4] sm:$0xf]
      %v237 = vld [vmem:[%s216 + $0x8] sm:$0xf]
      %v238 = vld [vmem:[%s216 + $0xc] sm:$0xf]
      %v239 = vld [vmem:[%s216 + $0x10] sm:$0xf]
      %v240 = vld [vmem:[%s216 + $0x14] sm:$0xf]
      %v241 = vld [vmem:[%s216 + $0x18] sm:$0xf]
      %v242 = vld [vmem:[%s216 + $0x1c] sm:$0xf]
      %v243 = vld [vmem:[%s216 + $0x20] sm:$0xf]
      %v244 = vld [vmem:[%s216 + $0x24] sm:$0xf]
      %v245 = vld [vmem:[%s216 + $0x28] sm:$0xf]
      %v246 = vld [vmem:[%s216 + $0x2c] sm:$0xf]
      %v247 = vld [vmem:[%s216 + $0x30] sm:$0xf]
      %v248 = vld [vmem:[%s216 + $0x34] sm:$0xf]
      %v249 = vld [vmem:[%s216 + $0x38] sm:$0xf]
      %v250 = vld [vmem:[%s216 + $0x3c] sm:$0xf]
      %v251 = vld [vmem:[%s1] sm:$0xf]
      %v252 = vld [vmem:[%s1 + $0x4] sm:$0xf]
      %v253 = vld [vmem:[%s1 + $0x8] sm:$0xf]
      %v254 = vld [vmem:[%s1 + $0xc] sm:$0xf]
      %v255 = vld [vmem:[%s1 + $0x10] sm:$0xf]
      %v256 = vld [vmem:[%s1 + $0x14] sm:$0xf]
      %v257 = vld [vmem:[%s1 + $0x18] sm:$0xf]
      %v258 = vld [vmem:[%s1 + $0x1c] sm:$0xf]
      %v259 = vld [vmem:[%s1 + $0x20] sm:$0xf]
      %v276 = vunpack.c.l.b16 %v235
      %v277 = vunpack.c.l.b16 %v236
      %v278 = vunpack.c.l.b16 %v237
      %v279 = vunpack.c.l.b16 %v238
      %v280 = vunpack.c.l.b16 %v239
      %v281 = vunpack.c.l.b16 %v240
      %v282 = vunpack.c.l.b16 %v241
      %v283 = vunpack.c.l.b16 %v242
      %v284 = vunpack.c.l.b16 %v243
      %v285 = vunpack.c.l.b16 %v244
      %v286 = vunpack.c.l.b16 %v245
      %v287 = vunpack.c.l.b16 %v246
      %v288 = vunpack.c.l.b16 %v247
      %v289 = vunpack.c.l.b16 %v248
      %v290 = vunpack.c.l.b16 %v249
      %v291 = vunpack.c.l.b16 %v250
      %v292 = vpack.c.b16 %v277, %v276
      %v293 = vpack.c.b16 %v279, %v278
      %v294 = vpack.c.b16 %v281, %v280
      %v295 = vpack.c.b16 %v283, %v282
      %v296 = vpack.c.b16 %v285, %v284
      %v297 = vpack.c.b16 %v287, %v286
      %v298 = vpack.c.b16 %v289, %v288
      %v299 = vpack.c.b16 %v291, %v290
      %v309 = vunpack.c.l.b16 %v251
      %v310 = vunpack.c.l.b16 %v252
      %v311 = vunpack.c.l.b16 %v253
      %v312 = vunpack.c.l.b16 %v254
      %v313 = vunpack.c.l.b16 %v255
      %v314 = vunpack.c.l.b16 %v256
      %v315 = vunpack.c.l.b16 %v257
      %v316 = vunpack.c.l.b16 %v258
      %v317 = vunpack.c.l.b16 %v259
      %v318 = vpack.c.b16 %v310, %v309
      %v319 = vpack.c.b16 %v312, %v311
      %v320 = vpack.c.b16 %v314, %v313
      %v321 = vpack.c.b16 %v316, %v315
      %v322 = vpack.c.b16 %v317, %v317
      %vm327 = vcmask 588800
      %v329 = vsel %vm327, %v292, 0
      %v332 = vsel %vm327, %v293, 0
      %v335 = vsel %vm327, %v294, 0
      %v338 = vsel %vm327, %v295, 0
      %v341 = vsel %vm327, %v296, 0
      %v344 = vsel %vm327, %v297, 0
      %v347 = vsel %vm327, %v298, 0
      %v350 = vsel %vm327, %v299, 0
      %vm352 = vcmask 1043456
      %v354 = vsel %vm352, %v322, 0
      %356 = vmatprep.subr.bf16.mxu0 0
      %357 = vmatpush1.bf16.msra.mxu0 %v318
      %358 = vmatprep.subr.bf16.mxu0 0
      %359 = vmatpush1.bf16.msra.mxu0 %v319
      %360 = vmatprep.subr.bf16.mxu0 0
      %361 = vmatpush1.bf16.msra.mxu0 %v320
      %362 = vmatprep.subr.bf16.mxu0 0
      %363 = vmatpush1.bf16.msra.mxu0 %v321
      %364 = vmatprep.subr.bf16.mxu0 0
      %365 = vmatpush1.bf16.msra.mxu0 %v354
      %366 = vmatprep.subr.bf16.mxu0 0
      %367 = vmatpush1.bf16.msra.mxu0 0
      %368 = vmatprep.subr.bf16.mxu0 0
      %369 = vmatpush1.bf16.msra.mxu0 0
      %370 = vmatprep.subr.bf16.mxu0 0
      %371 = vmatpush1.bf16.msra.mxu0 0
      %372 = vmatprep.subr.bf16.mxu0 0
      %373 = vmatpush1.bf16.msra.mxu0 0
      %374 = vmatprep.subr.bf16.mxu0 0
      %375 = vmatpush1.bf16.msra.mxu0 0
      %376 = vmatprep.subr.bf16.mxu0 0
      %377 = vmatpush1.bf16.msra.mxu0 0
      %378 = vmatprep.subr.bf16.mxu0 0
      %379 = vmatpush1.bf16.msra.mxu0 0
      %380 = vmatprep.subr.bf16.mxu0 0
      %381 = vmatpush1.bf16.msra.mxu0 0
      %382 = vmatprep.subr.bf16.mxu0 0
      %383 = vmatpush1.bf16.msra.mxu0 0
      %384 = vmatprep.subr.bf16.mxu0 0
      %385 = vmatpush1.bf16.msra.mxu0 0
      %386 = vmatprep.subr.bf16.mxu0 0
      %387 = vmatpush1.bf16.msra.mxu0 0
      %388 = vmatprep.mubr.bf16.mxu0 0
      %389 = vmatmul.mubr.bf16.gmra.mrb[0].mxu0 %v329
      %v390 = vpop.f32.mrb[0].mxu0
      %v391 = vadd.f32 0.0, %v390
      %v392 = vpop.f32.mrb[0].mxu0
      %v393 = vpop.f32.mrb[0].mxu0
      %v394 = vadd.f32 0.0, %v393
      %v395 = vpop.f32.mrb[0].mxu0
      %396 = vmatprep.mubr.bf16.mxu0 0
      %397 = vmatmul.mubr.bf16.gmra.mrb[0].mxu0 %v332
      %v398 = vpop.f32.mrb[0].mxu0
      %v399 = vadd.f32 0.0, %v398
      %v400 = vpop.f32.mrb[0].mxu0
      %v401 = vpop.f32.mrb[0].mxu0
      %v402 = vadd.f32 0.0, %v401
      %v403 = vpop.f32.mrb[0].mxu0
      %404 = vmatprep.mubr.bf16.mxu0 0
      %405 = vmatmul.mubr.bf16.gmra.mrb[0].mxu0 %v335
      %v406 = vpop.f32.mrb[0].mxu0
      %v407 = vadd.f32 0.0, %v406
      %v408 = vpop.f32.mrb[0].mxu0
      %v409 = vpop.f32.mrb[0].mxu0
      %v410 = vadd.f32 0.0, %v409
      %v411 = vpop.f32.mrb[0].mxu0
      %412 = vmatprep.mubr.bf16.mxu0 0
      %413 = vmatmul.mubr.bf16.gmra.mrb[0].mxu0 %v338
      %v414 = vpop.f32.mrb[0].mxu0
      %v415 = vadd.f32 0.0, %v414
      %v416 = vpop.f32.mrb[0].mxu0
      %v417 = vpop.f32.mrb[0].mxu0
      %v418 = vadd.f32 0.0, %v417
      %v419 = vpop.f32.mrb[0].mxu0
      %420 = vmatprep.mubr.bf16.mxu0 0
      %421 = vmatmul.mubr.bf16.gmra.mrb[0].mxu0 %v341
      %v422 = vpop.f32.mrb[0].mxu0
      %v423 = vadd.f32 0.0, %v422
      %v424 = vpop.f32.mrb[0].mxu0
      %v425 = vpop.f32.mrb[0].mxu0
      %v426 = vadd.f32 0.0, %v425
      %v427 = vpop.f32.mrb[0].mxu0
      %428 = vmatprep.mubr.bf16.mxu0 0
      %429 = vmatmul.mubr.bf16.gmra.mrb[0].mxu0 %v344
      %v430 = vpop.f32.mrb[0].mxu0
      %v431 = vadd.f32 0.0, %v430
      %v432 = vpop.f32.mrb[0].mxu0
      %v433 = vpop.f32.mrb[0].mxu0
      %v434 = vadd.f32 0.0, %v433
      %v435 = vpop.f32.mrb[0].mxu0
      %436 = vmatprep.mubr.bf16.mxu0 0
      %437 = vmatmul.mubr.bf16.gmra.mrb[0].mxu0 %v347
      %v438 = vpop.f32.mrb[0].mxu0
      %v439 = vadd.f32 0.0, %v438
      %v440 = vpop.f32.mrb[0].mxu0
      %v441 = vpop.f32.mrb[0].mxu0
      %v442 = vadd.f32 0.0, %v441
      %v443 = vpop.f32.mrb[0].mxu0
      %444 = vmatprep.mubr.bf16.mxu0 0
      %445 = vmatmul.mubr.bf16.gmra.mrb[0].mxu0 %v350
      %v446 = vpop.f32.mrb[0].mxu0
      %v447 = vadd.f32 0.0, %v446
      %v448 = vpop.f32.mrb[0].mxu0
      %v449 = vpop.f32.mrb[0].mxu0
      %v450 = vadd.f32 0.0, %v449
      %v451 = vpop.f32.mrb[0].mxu0
      %452 = vdwg.mxu0
      %v453 = vld [vmem:[%s222] sm:$0xf]
      %v454 = vld [vmem:[%s222 + $0x4] sm:$0xf]
      %v455 = vld [vmem:[%s222 + $0x8] sm:$0xf]
      %v456 = vld [vmem:[%s222 + $0xc] sm:$0xf]
      %v457 = vld [vmem:[%s222 + $0x10] sm:$0xf]
      %v458 = vld [vmem:[%s222 + $0x14] sm:$0xf]
      %v459 = vld [vmem:[%s222 + $0x18] sm:$0xf]
      %v460 = vld [vmem:[%s222 + $0x1c] sm:$0xf]
      %v461 = vld [vmem:[%s222 + $0x20] sm:$0xf]
      %v462 = vld [vmem:[%s222 + $0x24] sm:$0xf]
      %v463 = vld [vmem:[%s222 + $0x28] sm:$0xf]
      %v464 = vld [vmem:[%s222 + $0x2c] sm:$0xf]
      %v465 = vld [vmem:[%s222 + $0x30] sm:$0xf]
      %v466 = vld [vmem:[%s222 + $0x34] sm:$0xf]
      %v467 = vld [vmem:[%s222 + $0x38] sm:$0xf]
      %v468 = vld [vmem:[%s222 + $0x3c] sm:$0xf]
      %v469 = vunpack.c.l.bf16 %v453
      %v470 = vunpack.c.l.bf16 %v454
      %v471 = vunpack.c.l.bf16 %v455
      %v472 = vunpack.c.l.bf16 %v456
      %v473 = vunpack.c.l.bf16 %v457
      %v474 = vunpack.c.l.bf16 %v458
      %v475 = vunpack.c.l.bf16 %v459
      %v476 = vunpack.c.l.bf16 %v460
      %v477 = vunpack.c.l.bf16 %v461
      %v478 = vunpack.c.l.bf16 %v462
      %v479 = vunpack.c.l.bf16 %v463
      %v480 = vunpack.c.l.bf16 %v464
      %v481 = vunpack.c.l.bf16 %v465
      %v482 = vunpack.c.l.bf16 %v466
      %v483 = vunpack.c.l.bf16 %v467
      %v484 = vunpack.c.l.bf16 %v468
      %v485 = vadd.f32 %v469, %v391
      %v486 = vadd.f32 %v470, %v394
      %v487 = vadd.f32 %v471, %v399
      %v488 = vadd.f32 %v472, %v402
      %v489 = vadd.f32 %v473, %v407
      %v490 = vadd.f32 %v474, %v410
      %v491 = vadd.f32 %v475, %v415
      %v492 = vadd.f32 %v476, %v418
      %v493 = vadd.f32 %v477, %v423
      %v494 = vadd.f32 %v478, %v426
      %v495 = vadd.f32 %v479, %v431
      %v496 = vadd.f32 %v480, %v434
      %v497 = vadd.f32 %v481, %v439
      %v498 = vadd.f32 %v482, %v442
      %v499 = vadd.f32 %v483, %v447
      %v500 = vadd.f32 %v484, %v450
      %v501 = vmax.f32 %v485, 0.0
      %v502 = vmax.f32 %v486, 0.0
      %v503 = vmax.f32 %v487, 0.0
      %v504 = vmax.f32 %v488, 0.0
      %v505 = vmax.f32 %v489, 0.0
      %v506 = vmax.f32 %v490, 0.0
      %v507 = vmax.f32 %v491, 0.0
      %v508 = vmax.f32 %v492, 0.0
      %v509 = vmax.f32 %v493, 0.0
      %v510 = vmax.f32 %v494, 0.0
      %v511 = vmax.f32 %v495, 0.0
      %v512 = vmax.f32 %v496, 0.0
      %v513 = vmax.f32 %v497, 0.0
      %v514 = vmax.f32 %v498, 0.0
      %v515 = vmax.f32 %v499, 0.0
      %v516 = vmax.f32 %v500, 0.0
      %vm517 = vcmask 31744
      %v518 = vsel %vm517, %v501, 0.0
      %v519 = vsel %vm517, %v502, 0.0
      %v520 = vadd.f32 %v518, %v519
      %v521 = vsel %vm517, %v503, 0.0
      %v522 = vadd.f32 %v520, %v521
      %v523 = vsel %vm517, %v504, 0.0
      %v524 = vadd.f32 %v522, %v523
      %v525 = vsel %vm517, %v505, 0.0
      %v526 = vadd.f32 %v524, %v525
      %v527 = vsel %vm517, %v506, 0.0
      %v528 = vadd.f32 %v526, %v527
      %v529 = vsel %vm517, %v507, 0.0
      %v530 = vadd.f32 %v528, %v529
      %v531 = vsel %vm517, %v508, 0.0
      %v532 = vadd.f32 %v530, %v531
      %v533 = vsel %vm517, %v509, 0.0
      %v534 = vadd.f32 %v532, %v533
      %v535 = vsel %vm517, %v510, 0.0
      %v536 = vadd.f32 %v534, %v535
      %v537 = vsel %vm517, %v511, 0.0
      %v538 = vadd.f32 %v536, %v537
      %v539 = vsel %vm517, %v512, 0.0
      %v540 = vadd.f32 %v538, %v539
      %v541 = vsel %vm517, %v513, 0.0
      %v542 = vadd.f32 %v540, %v541
      %v543 = vsel %vm517, %v514, 0.0
      %v544 = vadd.f32 %v542, %v543
      %v545 = vsel %vm517, %v515, 0.0
      %v546 = vadd.f32 %v544, %v545
      %v547 = vsel %vm517, %v516, 0.0
      %v548 = vadd.f32 %v546, %v547
      %v549 = vrot.slane %v548, 4
      %v550 = vadd.f32 %v548, %v549
      %v551 = vrot.slane %v550, 2
      %v552 = vadd.f32 %v550, %v551
      %v553 = vrot.slane %v552, 1
      %v554 = vadd.f32 %v552, %v553
      %v555 = vmul.f32 %v501, %v501
      %v556 = vmul.f32 %v502, %v502
      %v557 = vmul.f32 %v503, %v503
      %v558 = vmul.f32 %v504, %v504
      %v559 = vmul.f32 %v505, %v505
      %v560 = vmul.f32 %v506, %v506
      %v561 = vmul.f32 %v507, %v507
      %v562 = vmul.f32 %v508, %v508
      %v563 = vmul.f32 %v509, %v509
      %v564 = vmul.f32 %v510, %v510
      %v565 = vmul.f32 %v511, %v511
      %v566 = vmul.f32 %v512, %v512
      %v567 = vmul.f32 %v513, %v513
      %v568 = vmul.f32 %v514, %v514
      %v569 = vmul.f32 %v515, %v515
      %v570 = vmul.f32 %v516, %v516
      %v571 = vsel %vm517, %v555, 0.0
      %v572 = vsel %vm517, %v556, 0.0
      %v573 = vadd.f32 %v571, %v572
      %v574 = vsel %vm517, %v557, 0.0
      %v575 = vadd.f32 %v573, %v574
      %v576 = vsel %vm517, %v558, 0.0
      %v577 = vadd.f32 %v575, %v576
      %v578 = vsel %vm517, %v559, 0.0
      %v579 = vadd.f32 %v577, %v578
      %v580 = vsel %vm517, %v560, 0.0
      %v581 = vadd.f32 %v579, %v580
      %v582 = vsel %vm517, %v561, 0.0
      %v583 = vadd.f32 %v581, %v582
      %v584 = vsel %vm517, %v562, 0.0
      %v585 = vadd.f32 %v583, %v584
      %v586 = vsel %vm517, %v563, 0.0
      %v587 = vadd.f32 %v585, %v586
      %v588 = vsel %vm517, %v564, 0.0
      %v589 = vadd.f32 %v587, %v588
      %v590 = vsel %vm517, %v565, 0.0
      %v591 = vadd.f32 %v589, %v590
      %v592 = vsel %vm517, %v566, 0.0
      %v593 = vadd.f32 %v591, %v592
      %v594 = vsel %vm517, %v567, 0.0
      %v595 = vadd.f32 %v593, %v594
      %v596 = vsel %vm517, %v568, 0.0
      %v597 = vadd.f32 %v595, %v596
      %v598 = vsel %vm517, %v569, 0.0
      %v599 = vadd.f32 %v597, %v598
      %v600 = vsel %vm517, %v570, 0.0
      %v601 = vadd.f32 %v599, %v600
      %v602 = vrot.slane %v601, 4
      %v603 = vadd.f32 %v601, %v602
      %v604 = vrot.slane %v603, 2
      %v605 = vadd.f32 %v603, %v604
      %v606 = vrot.slane %v605, 1
      %v607 = vadd.f32 %v605, %v606
      %vm608 = vcmask 1040384
      %v609 = vsel %vm608, %v554, %v607
      %vm610 = vcmask 25600
      %611 = vst.msk [vmem:[%s233] sm:$0x3] %vm610, %v609
      %v612 = vpack.c.bf16 %v502, %v501
      %v613 = vpack.c.bf16 %v504, %v503
      %v614 = vpack.c.bf16 %v506, %v505
      %v615 = vpack.c.bf16 %v508, %v507
      %v616 = vpack.c.bf16 %v510, %v509
      %v617 = vpack.c.bf16 %v512, %v511
      %v618 = vpack.c.bf16 %v514, %v513
      %v619 = vpack.c.bf16 %v516, %v515
      %v628 = vunpack.c.l.b16 %v612
      %v629 = vunpack.c.h.b16 %v612
      %v630 = vunpack.c.l.b16 %v613
      %v631 = vunpack.c.h.b16 %v613
      %v632 = vunpack.c.l.b16 %v614
      %v633 = vunpack.c.h.b16 %v614
      %v634 = vunpack.c.l.b16 %v615
      %v635 = vunpack.c.h.b16 %v615
      %v636 = vunpack.c.l.b16 %v616
      %v637 = vunpack.c.h.b16 %v616
      %v638 = vunpack.c.l.b16 %v617
      %v639 = vunpack.c.h.b16 %v617
      %v640 = vunpack.c.l.b16 %v618
      %v641 = vunpack.c.h.b16 %v618
      %v642 = vunpack.c.l.b16 %v619
      %v643 = vunpack.c.h.b16 %v619
      %v644 = vpack.c.b16 %v628, %v628
      %v645 = vpack.c.b16 %v629, %v629
      %v646 = vpack.c.b16 %v630, %v630
      %v647 = vpack.c.b16 %v631, %v631
      %v648 = vpack.c.b16 %v632, %v632
      %v649 = vpack.c.b16 %v633, %v633
      %v650 = vpack.c.b16 %v634, %v634
      %v651 = vpack.c.b16 %v635, %v635
      %v652 = vpack.c.b16 %v636, %v636
      %v653 = vpack.c.b16 %v637, %v637
      %v654 = vpack.c.b16 %v638, %v638
      %v655 = vpack.c.b16 %v639, %v639
      %v656 = vpack.c.b16 %v640, %v640
      %v657 = vpack.c.b16 %v641, %v641
      %v658 = vpack.c.b16 %v642, %v642
      %v659 = vpack.c.b16 %v643, %v643
      %vm676 = vcmask 27648
      %677 = vst.msk [vmem:[%s228] sm:$0xf] %vm676, %v644
      %678 = vst.msk [vmem:[%s228 + $0x4] sm:$0xf] %vm676, %v645
      %679 = vst.msk [vmem:[%s228 + $0x8] sm:$0xf] %vm676, %v646
      %680 = vst.msk [vmem:[%s228 + $0xc] sm:$0xf] %vm676, %v647
      %681 = vst.msk [vmem:[%s228 + $0x10] sm:$0xf] %vm676, %v648
      %682 = vst.msk [vmem:[%s228 + $0x14] sm:$0xf] %vm676, %v649
      %683 = vst.msk [vmem:[%s228 + $0x18] sm:$0xf] %vm676, %v650
      %684 = vst.msk [vmem:[%s228 + $0x1c] sm:$0xf] %vm676, %v651
      %685 = vst.msk [vmem:[%s228 + $0x20] sm:$0xf] %vm676, %v652
      %686 = vst.msk [vmem:[%s228 + $0x24] sm:$0xf] %vm676, %v653
      %687 = vst.msk [vmem:[%s228 + $0x28] sm:$0xf] %vm676, %v654
      %688 = vst.msk [vmem:[%s228 + $0x2c] sm:$0xf] %vm676, %v655
      %689 = vst.msk [vmem:[%s228 + $0x30] sm:$0xf] %vm676, %v656
      %690 = vst.msk [vmem:[%s228 + $0x34] sm:$0xf] %vm676, %v657
      %691 = vst.msk [vmem:[%s228 + $0x38] sm:$0xf] %vm676, %v658
      %692 = vst.msk [vmem:[%s228 + $0x3c] sm:$0xf] %vm676, %v659
      %s693 = smul.u32 16, %s16
      %p694 = scmp.lt.s32.totalorder %s693, 63
      %s695 = scalar_select %p694, %s693, 63
      %s696 = smul.addr %s695, 4
      %s697 = scalar_lea.vmem %s3, %s696
      %p698 = scmp.lt.s32.totalorder %s16, 3
      %s699 = scalar_select %p698, %s16, 3
      %s700 = smul.addr %s699, 2
      %s701 = scalar_lea.vmem %s4, %s700
      // Predicated region
      $region33: #{_lambda_.4} parent=31 // pred_check
        %p702 = pneg %p107
      $region34: #{_lambda_.4} parent=31 // pred_check_branch
        %704 = sbr.rel (%p702) target = $region36
      $region35: #{_lambda_.4} parent=31 // pred_region
        %s705 = smul.u32 16, %s16
      $region36: #{_lambda_.4} parent=31 // pred_fallthru
        _
      // Predicated region
      $region37: #{_lambda_.4} parent=31 // pred_check
        %p706 = pneg %p133
      $region38: #{_lambda_.4} parent=31 // pred_check_branch
        %708 = sbr.rel (%p706) target = $region40
      $region39: #{_lambda_.4} parent=31 // pred_region
        _
      $region40: #{_lambda_.4} parent=31 // pred_fallthru
        _
    $region32: #{_lambda_.4} parent=5 // pred_fallthru
      _
    %p709 = scmp.le.s32.totalorder 2, %s11
    // Predicated region
    $region41: #{_lambda_.4} parent=5 // pred_check
      %p710 = pneg %p709
    $region42: #{_lambda_.4} parent=5 // pred_check_branch
      %712 = sbr.rel (%p710) target = $region44
    $region43: #{_lambda_.4} parent=5 // pred_region
      %s713 = ssub.s32 %s11, 2
      // Predicated region
      $region45: #{_lambda_.4} parent=43 // pred_check
        %p714 = pneg %p113
      $region46: #{_lambda_.4} parent=43 // pred_check_branch
        %716 = sbr.rel (%p714) target = $region48
      $region47: #{_lambda_.4} parent=43 // pred_region
        %s717 = smul.u32 16, %s17
        %p718 = scmp.lt.s32.totalorder %s717, 63
        %s719 = scalar_select %p718, %s717, 63
        %s720 = smul.addr %s719, 4
        %s721 = scalar_lea.vmem %s3, %s720
      $region48: #{_lambda_.4} parent=43 // pred_fallthru
        _
      // Predicated region
      $region49: #{_lambda_.4} parent=43 // pred_check
        %p722 = pneg %p139
      $region50: #{_lambda_.4} parent=43 // pred_check_branch
        %724 = sbr.rel (%p722) target = $region52
      $region51: #{_lambda_.4} parent=43 // pred_region
        %p725 = scmp.lt.s32.totalorder %s17, 3
        %s726 = scalar_select %p725, %s17, 3
        %s727 = smul.addr %s726, 2
        %s728 = scalar_lea.vmem %s4, %s727
      $region52: #{_lambda_.4} parent=43 // pred_fallthru
        _
    $region44: #{_lambda_.4} parent=5 // pred_fallthru
      _
  $region6: #{_lambda_.4} parent=0 // loop_footer
    %s15 = sadd.s32 1, %s11
  $region7: #{_lambda_.4} parent=0 // loop_footer_branch
    %10 = sbr.rel target = $region3
  $region8: #{_lambda_.4} parent=0 // loop_exit
    _

// kernel: _lambda_.5
$region0: #{_lambda_.5}
  #allocation0 [shape = 'u32[]', space=smem, size = 0x4, offset = 0x4, fixed_abs, tag = 'smem constant byte address 0x4 - core index']
  #allocation1 [shape = 'u32[144,128]{1,0:T(1,128)}', space=vmem, size = 0x12000, scoped, tag = 'internal scratch']
  %s0 = inlined_call_operand.vmem [shape: bf16[512,4], index: 0, kind: input, shape index: {}]
  %s1 = inlined_call_operand.vmem [shape: f32[1,4], index: 1, kind: input, shape index: {}]
  %s2 = inlined_call_operand.vmem [shape: f32[1,4], index: 2, kind: input, shape index: {}]
  %s3 = inlined_call_operand.vmem [shape: f32[512,4], index: 3, kind: output, shape index: {}]
  %s4 = sld [smem:[#allocation0]]
  $region45: #{_lambda_.5} parent=0
    _
  %s6 = ssub.s32 1, %s4
  %s7 = scalar_select 0, %s6, %s4
  loop: start=0, step=1, limit=4
  $region2: #{_lambda_.5} parent=0 // loop_pre_header
    _
  $region3: #{_lambda_.5} parent=0 // loop_header
    %s9 = sphi 0, %s13
    %p10 = scmp.ge.s32.totalorder %s9, 4
    %s19 = sphi 0, %s21
    %s22 = sphi 0, %s19
    %s23 = sphi 0, %s22
    %s39 = sphi 0, %s23
    %s43 = sphi 0, %s43
    %s45 = sphi 0, %s43
    %s46 = sphi 0, %s45
    %s60 = sphi 0, %s46
    %s64 = sphi 0, %s64
    %s66 = sphi 0, %s64
    %s67 = sphi 0, %s66
    %s81 = sphi 0, %s67
    %s87 = sphi 0, %s89
    %s90 = sphi 0, %s87
    %s91 = sphi 0, %s90
    %s107 = sphi 0, %s91
  $region4: #{_lambda_.5} parent=0 // loop_header_branch
    %12 = sbr.rel (%p10) target = $region8
  $region5: #{_lambda_.5} parent=0 // loop_body
    %s14 = ssub.s32 %s9, 1
    %s15 = ssub.s32 %s9, 2
    %s16 = sadd.s32 %s9, 1
    %s17 = ssub.s32 %s9, %s16
    %p18 = scmp.eq.s32.totalorder %s17, 0
    %s20 = sadd.s32 %s19, 1
    %s21 = scalar_select %p18, %s19, %s20
    %p24 = pneg %p18
    %p25 = scmp.eq.s32.totalorder %s9, 1
    %p26 = por %p24, %p25
    %p27 = scmp.ne.s32.totalorder %s19, %s22
    %p28 = scmp.eq.s32.totalorder %s9, 0
    %p29 = por %p27, %p28
    %p30 = scmp.ne.s32.totalorder %s19, %s22
    %p31 = scmp.eq.s32.totalorder %s14, 1
    %p32 = por %p30, %p31
    %p33 = scmp.ne.s32.totalorder %s22, %s23
    %p34 = scmp.eq.s32.totalorder %s14, 0
    %p35 = por %p33, %p34
    %p36 = scmp.ne.s32.totalorder %s22, %s23
    %p37 = scmp.eq.s32.totalorder %s15, 1
    %p38 = por %p36, %p37
    %p40 = scmp.ne.s32.totalorder %s23, %s39
    %p41 = scmp.eq.s32.totalorder %s15, 0
    %p42 = por %p40, %p41
    %s44 = sadd.s32 %s43, 1
    %p47 = scmp.eq.s32.totalorder %s9, 1
    %p48 = scmp.ne.s32.totalorder %s43, %s45
    %p49 = scmp.eq.s32.totalorder %s9, 0
    %p50 = por %p48, %p49
    %p51 = scmp.ne.s32.totalorder %s43, %s45
    %p52 = scmp.eq.s32.totalorder %s14, 1
    %p53 = por %p51, %p52
    %p54 = scmp.ne.s32.totalorder %s45, %s46
    %p55 = scmp.eq.s32.totalorder %s14, 0
    %p56 = por %p54, %p55
    %p57 = scmp.ne.s32.totalorder %s45, %s46
    %p58 = scmp.eq.s32.totalorder %s15, 1
    %p59 = por %p57, %p58
    %p61 = scmp.ne.s32.totalorder %s46, %s60
    %p62 = scmp.eq.s32.totalorder %s15, 0
    %p63 = por %p61, %p62
    %s65 = sadd.s32 %s64, 1
    %p68 = scmp.eq.s32.totalorder %s9, 1
    %p69 = scmp.ne.s32.totalorder %s64, %s66
    %p70 = scmp.eq.s32.totalorder %s9, 0
    %p71 = por %p69, %p70
    %p72 = scmp.ne.s32.totalorder %s64, %s66
    %p73 = scmp.eq.s32.totalorder %s14, 1
    %p74 = por %p72, %p73
    %p75 = scmp.ne.s32.totalorder %s66, %s67
    %p76 = scmp.eq.s32.totalorder %s14, 0
    %p77 = por %p75, %p76
    %p78 = scmp.ne.s32.totalorder %s66, %s67
    %p79 = scmp.eq.s32.totalorder %s15, 1
    %p80 = por %p78, %p79
    %p82 = scmp.ne.s32.totalorder %s67, %s81
    %p83 = scmp.eq.s32.totalorder %s15, 0
    %p84 = por %p82, %p83
    %s85 = ssub.s32 %s9, %s16
    %p86 = scmp.eq.s32.totalorder %s85, 0
    %s88 = sadd.s32 %s87, 1
    %s89 = scalar_select %p86, %s87, %s88
    %p92 = pneg %p86
    %p93 = scmp.eq.s32.totalorder %s9, 1
    %p94 = por %p92, %p93
    %p95 = scmp.ne.s32.totalorder %s87, %s90
    %p96 = scmp.eq.s32.totalorder %s9, 0
    %p97 = por %p95, %p96
    %p98 = scmp.ne.s32.totalorder %s87, %s90
    %p99 = scmp.eq.s32.totalorder %s14, 1
    %p100 = por %p98, %p99
    %p101 = scmp.ne.s32.totalorder %s90, %s91
    %p102 = scmp.eq.s32.totalorder %s14, 0
    %p103 = por %p101, %p102
    %p104 = scmp.ne.s32.totalorder %s90, %s91
    %p105 = scmp.eq.s32.totalorder %s15, 1
    %p106 = por %p104, %p105
    %p108 = scmp.ne.s32.totalorder %s91, %s107
    %p109 = scmp.eq.s32.totalorder %s15, 0
    %p110 = por %p108, %p109
    %p111 = scmp.le.s32.totalorder 1, %s9
    %p112 = scmp.lt.s32.totalorder %s9, 3
    %p113 = pnand %p111, %p112
    %p114 = pneg %p113
    // Predicated region
    $region9: #{_lambda_.5} parent=5 // pred_check
      _
    $region10: #{_lambda_.5} parent=5 // pred_check_branch
      %116 = sbr.rel (%p113) target = $region12
    $region11: #{_lambda_.5} parent=5 // pred_region
      %s117 = ssub.s32 %s9, 1
      // Predicated region
      $region13: #{_lambda_.5} parent=11 // pred_check
        %p118 = pneg %p56
      $region14: #{_lambda_.5} parent=11 // pred_check_branch
        %120 = sbr.rel (%p118) target = $region16
      $region15: #{_lambda_.5} parent=11 // pred_region
        _
      $region16: #{_lambda_.5} parent=11 // pred_fallthru
        _
      // Predicated region
      $region17: #{_lambda_.5} parent=11 // pred_check
        %p121 = pneg %p77
      $region18: #{_lambda_.5} parent=11 // pred_check_branch
        %123 = sbr.rel (%p121) target = $region20
      $region19: #{_lambda_.5} parent=11 // pred_region
        _
      $region20: #{_lambda_.5} parent=11 // pred_fallthru
        _
    $region12: #{_lambda_.5} parent=5 // pred_fallthru
      _
    %p124 = scmp.lt.s32.totalorder %s9, 2
    // Predicated region
    $region21: #{_lambda_.5} parent=5 // pred_check
      %p125 = pneg %p124
    $region22: #{_lambda_.5} parent=5 // pred_check_branch
      %127 = sbr.rel (%p125) target = $region24
    $region23: #{_lambda_.5} parent=5 // pred_region
      // Predicated region
      $region25: #{_lambda_.5} parent=23 // pred_check
        %p128 = pneg %p29
      $region26: #{_lambda_.5} parent=23 // pred_check_branch
        %130 = sbr.rel (%p128) target = $region28
      $region27: #{_lambda_.5} parent=23 // pred_region
        %s131 = smul.u32 32, %s9
        %p132 = scmp.lt.s32.totalorder %s131, 63
        %s133 = scalar_select %p132, %s131, 63
        %s134 = smul.addr %s133, 4
        %s135 = scalar_lea.vmem %s0, %s134
        %s136 = smul.u32 32, %s9
      $region28: #{_lambda_.5} parent=23 // pred_fallthru
        _
    $region24: #{_lambda_.5} parent=5 // pred_fallthru
      _
    %p137 = scmp.le.s32.totalorder 1, %s9
    %p138 = scmp.lt.s32.totalorder %s9, 3
    %p139 = pnand %p137, %p138
    %p140 = pneg %p139
    // Predicated region
    $region29: #{_lambda_.5} parent=5 // pred_check
      _
    $region30: #{_lambda_.5} parent=5 // pred_check_branch
      %142 = sbr.rel (%p139) target = $region32
    $region31: #{_lambda_.5} parent=5 // pred_region
      %s143 = ssub.s32 %s9, 1
      %s144 = smul.u32 32, %s14
      %p145 = scmp.lt.s32.totalorder %s144, 63
      %s146 = scalar_select %p145, %s144, 63
      %s147 = smul.addr %s146, 4
      %s148 = scalar_lea.vmem %s0, %s147
      %p149 = pneg %p35
      %p150 = pneg %p32
      %p151 = pneg %p56
      %p152 = pneg %p53
      %p153 = pneg %p77
      %p154 = pneg %p74
      %p155 = pneg %p103
      %p156 = pneg %p100
      %s157 = smul.u32 32, %s14
      %p158 = scmp.lt.s32.totalorder %s157, 63
      %s159 = scalar_select %p158, %s157, 63
      %s160 = smul.addr %s159, 8
      %s161 = scalar_lea.vmem %s3, %s160
      %s162 = smul.u32 32, %s14
      %p163 = scmp.lt.s32.totalorder %s162, 63
      %s164 = scalar_select %p163, %s162, 63
      %s165 = smul.addr %s164, 4
      %s166 = scalar_lea.vmem %s0, %s165
      %s167 = smul.u32 32, %s14
      %s168 = smul.u32 32, %s14
      %p169 = scmp.lt.s32.totalorder %s168, 63
      %s170 = scalar_select %p169, %s168, 63
      %s171 = smul.addr %s170, 8
      %s172 = scalar_lea.vmem %s3, %s171
      %s173 = smul.u32 32, %s14
      %v174 = vld [vmem:[%s166] sm:$0xf]
      %v175 = vld [vmem:[%s166 + $0x4] sm:$0xf]
      %v176 = vld [vmem:[%s166 + $0x8] sm:$0xf]
      %v177 = vld [vmem:[%s166 + $0xc] sm:$0xf]
      %v178 = vld [vmem:[%s166 + $0x10] sm:$0xf]
      %v179 = vld [vmem:[%s166 + $0x14] sm:$0xf]
      %v180 = vld [vmem:[%s166 + $0x18] sm:$0xf]
      %v181 = vld [vmem:[%s166 + $0x1c] sm:$0xf]
      %v182 = vld [vmem:[%s166 + $0x20] sm:$0xf]
      %v183 = vld [vmem:[%s166 + $0x24] sm:$0xf]
      %v184 = vld [vmem:[%s166 + $0x28] sm:$0xf]
      %v185 = vld [vmem:[%s166 + $0x2c] sm:$0xf]
      %v186 = vld [vmem:[%s166 + $0x30] sm:$0xf]
      %v187 = vld [vmem:[%s166 + $0x34] sm:$0xf]
      %v188 = vld [vmem:[%s166 + $0x38] sm:$0xf]
      %v189 = vld [vmem:[%s166 + $0x3c] sm:$0xf]
      %v190 = vld [vmem:[%s166 + $0x40] sm:$0xf]
      %v191 = vld [vmem:[%s166 + $0x44] sm:$0xf]
      %v192 = vld [vmem:[%s166 + $0x48] sm:$0xf]
      %v193 = vld [vmem:[%s166 + $0x4c] sm:$0xf]
      %v194 = vld [vmem:[%s166 + $0x50] sm:$0xf]
      %v195 = vld [vmem:[%s166 + $0x54] sm:$0xf]
      %v196 = vld [vmem:[%s166 + $0x58] sm:$0xf]
      %v197 = vld [vmem:[%s166 + $0x5c] sm:$0xf]
      %v198 = vld [vmem:[%s166 + $0x60] sm:$0xf]
      %v199 = vld [vmem:[%s166 + $0x64] sm:$0xf]
      %v200 = vld [vmem:[%s166 + $0x68] sm:$0xf]
      %v201 = vld [vmem:[%s166 + $0x6c] sm:$0xf]
      %v202 = vld [vmem:[%s166 + $0x70] sm:$0xf]
      %v203 = vld [vmem:[%s166 + $0x74] sm:$0xf]
      %v204 = vld [vmem:[%s166 + $0x78] sm:$0xf]
      %v205 = vld [vmem:[%s166 + $0x7c] sm:$0xf]
      %v206 = vunpack.c.l.bf16 %v174
      %v207 = vunpack.c.l.bf16 %v175
      %v208 = vunpack.c.l.bf16 %v176
      %v209 = vunpack.c.l.bf16 %v177
      %v210 = vunpack.c.l.bf16 %v178
      %v211 = vunpack.c.l.bf16 %v179
      %v212 = vunpack.c.l.bf16 %v180
      %v213 = vunpack.c.l.bf16 %v181
      %v214 = vunpack.c.l.bf16 %v182
      %v215 = vunpack.c.l.bf16 %v183
      %v216 = vunpack.c.l.bf16 %v184
      %v217 = vunpack.c.l.bf16 %v185
      %v218 = vunpack.c.l.bf16 %v186
      %v219 = vunpack.c.l.bf16 %v187
      %v220 = vunpack.c.l.bf16 %v188
      %v221 = vunpack.c.l.bf16 %v189
      %v222 = vunpack.c.l.bf16 %v190
      %v223 = vunpack.c.l.bf16 %v191
      %v224 = vunpack.c.l.bf16 %v192
      %v225 = vunpack.c.l.bf16 %v193
      %v226 = vunpack.c.l.bf16 %v194
      %v227 = vunpack.c.l.bf16 %v195
      %v228 = vunpack.c.l.bf16 %v196
      %v229 = vunpack.c.l.bf16 %v197
      %v230 = vunpack.c.l.bf16 %v198
      %v231 = vunpack.c.l.bf16 %v199
      %v232 = vunpack.c.l.bf16 %v200
      %v233 = vunpack.c.l.bf16 %v201
      %v234 = vunpack.c.l.bf16 %v202
      %v235 = vunpack.c.l.bf16 %v203
      %v236 = vunpack.c.l.bf16 %v204
      %v237 = vunpack.c.l.bf16 %v205
      %v238 = vld [vmem:[%s1] sm:$0x1]
      %v240 = vlaneseq
      %v241 = vshrl.u32 %v240, 7
      %v242 = vsub.s32 0, %v241
      %v243 = vrot.slane %v238, %v242
      %v245 = vmul.f32 %v206, %v243
      %v246 = vmul.f32 %v207, %v243
      %v247 = vmul.f32 %v208, %v243
      %v248 = vmul.f32 %v209, %v243
      %v249 = vmul.f32 %v210, %v243
      %v250 = vmul.f32 %v211, %v243
      %v251 = vmul.f32 %v212, %v243
      %v252 = vmul.f32 %v213, %v243
      %v253 = vmul.f32 %v214, %v243
      %v254 = vmul.f32 %v215, %v243
      %v255 = vmul.f32 %v216, %v243
      %v256 = vmul.f32 %v217, %v243
      %v257 = vmul.f32 %v218, %v243
      %v258 = vmul.f32 %v219, %v243
      %v259 = vmul.f32 %v220, %v243
      %v260 = vmul.f32 %v221, %v243
      %v261 = vmul.f32 %v222, %v243
      %v262 = vmul.f32 %v223, %v243
      %v263 = vmul.f32 %v224, %v243
      %v264 = vmul.f32 %v225, %v243
      %v265 = vmul.f32 %v226, %v243
      %v266 = vmul.f32 %v227, %v243
      %v267 = vmul.f32 %v228, %v243
      %v268 = vmul.f32 %v229, %v243
      %v269 = vmul.f32 %v230, %v243
      %v270 = vmul.f32 %v231, %v243
      %v271 = vmul.f32 %v232, %v243
      %v272 = vmul.f32 %v233, %v243
      %v273 = vmul.f32 %v234, %v243
      %v274 = vmul.f32 %v235, %v243
      %v275 = vmul.f32 %v236, %v243
      %v276 = vmul.f32 %v237, %v243
      %v277 = vld [vmem:[%s2] sm:$0x1]
      %v279 = vlaneseq
      %v280 = vshrl.u32 %v279, 7
      %v281 = vsub.s32 0, %v280
      %v282 = vrot.slane %v277, %v281
      %v284 = vadd.f32 %v245, %v282
      %v285 = vadd.f32 %v246, %v282
      %v286 = vadd.f32 %v247, %v282
      %v287 = vadd.f32 %v248, %v282
      %v288 = vadd.f32 %v249, %v282
      %v289 = vadd.f32 %v250, %v282
      %v290 = vadd.f32 %v251, %v282
      %v291 = vadd.f32 %v252, %v282
      %v292 = vadd.f32 %v253, %v282
      %v293 = vadd.f32 %v254, %v282
      %v294 = vadd.f32 %v255, %v282
      %v295 = vadd.f32 %v256, %v282
      %v296 = vadd.f32 %v257, %v282
      %v297 = vadd.f32 %v258, %v282
      %v298 = vadd.f32 %v259, %v282
      %v299 = vadd.f32 %v260, %v282
      %v300 = vadd.f32 %v261, %v282
      %v301 = vadd.f32 %v262, %v282
      %v302 = vadd.f32 %v263, %v282
      %v303 = vadd.f32 %v264, %v282
      %v304 = vadd.f32 %v265, %v282
      %v305 = vadd.f32 %v266, %v282
      %v306 = vadd.f32 %v267, %v282
      %v307 = vadd.f32 %v268, %v282
      %v308 = vadd.f32 %v269, %v282
      %v309 = vadd.f32 %v270, %v282
      %v310 = vadd.f32 %v271, %v282
      %v311 = vadd.f32 %v272, %v282
      %v312 = vadd.f32 %v273, %v282
      %v313 = vadd.f32 %v274, %v282
      %v314 = vadd.f32 %v275, %v282
      %v315 = vadd.f32 %v276, %v282
      %vm316 = vcmask 31744
      %317 = vst.msk [vmem:[%s172] sm:$0xff] %vm316, %v284
      %318 = vst.msk [vmem:[%s172 + $0x8] sm:$0xff] %vm316, %v285
      %319 = vst.msk [vmem:[%s172 + $0x10] sm:$0xff] %vm316, %v286
      %320 = vst.msk [vmem:[%s172 + $0x18] sm:$0xff] %vm316, %v287
      %321 = vst.msk [vmem:[%s172 + $0x20] sm:$0xff] %vm316, %v288
      %322 = vst.msk [vmem:[%s172 + $0x28] sm:$0xff] %vm316, %v289
      %323 = vst.msk [vmem:[%s172 + $0x30] sm:$0xff] %vm316, %v290
      %324 = vst.msk [vmem:[%s172 + $0x38] sm:$0xff] %vm316, %v291
      %325 = vst.msk [vmem:[%s172 + $0x40] sm:$0xff] %vm316, %v292
      %326 = vst.msk [vmem:[%s172 + $0x48] sm:$0xff] %vm316, %v293
      %327 = vst.msk [vmem:[%s172 + $0x50] sm:$0xff] %vm316, %v294
      %328 = vst.msk [vmem:[%s172 + $0x58] sm:$0xff] %vm316, %v295
      %329 = vst.msk [vmem:[%s172 + $0x60] sm:$0xff] %vm316, %v296
      %330 = vst.msk [vmem:[%s172 + $0x68] sm:$0xff] %vm316, %v297
      %331 = vst.msk [vmem:[%s172 + $0x70] sm:$0xff] %vm316, %v298
      %332 = vst.msk [vmem:[%s172 + $0x78] sm:$0xff] %vm316, %v299
      %333 = vst.msk [vmem:[%s172 + $0x80] sm:$0xff] %vm316, %v300
      %334 = vst.msk [vmem:[%s172 + $0x88] sm:$0xff] %vm316, %v301
      %335 = vst.msk [vmem:[%s172 + $0x90] sm:$0xff] %vm316, %v302
      %336 = vst.msk [vmem:[%s172 + $0x98] sm:$0xff] %vm316, %v303
      %337 = vst.msk [vmem:[%s172 + $0xa0] sm:$0xff] %vm316, %v304
      %338 = vst.msk [vmem:[%s172 + $0xa8] sm:$0xff] %vm316, %v305
      %339 = vst.msk [vmem:[%s172 + $0xb0] sm:$0xff] %vm316, %v306
      %340 = vst.msk [vmem:[%s172 + $0xb8] sm:$0xff] %vm316, %v307
      %341 = vst.msk [vmem:[%s172 + $0xc0] sm:$0xff] %vm316, %v308
      %342 = vst.msk [vmem:[%s172 + $0xc8] sm:$0xff] %vm316, %v309
      %343 = vst.msk [vmem:[%s172 + $0xd0] sm:$0xff] %vm316, %v310
      %344 = vst.msk [vmem:[%s172 + $0xd8] sm:$0xff] %vm316, %v311
      %345 = vst.msk [vmem:[%s172 + $0xe0] sm:$0xff] %vm316, %v312
      %346 = vst.msk [vmem:[%s172 + $0xe8] sm:$0xff] %vm316, %v313
      %347 = vst.msk [vmem:[%s172 + $0xf0] sm:$0xff] %vm316, %v314
      %348 = vst.msk [vmem:[%s172 + $0xf8] sm:$0xff] %vm316, %v315
      %s349 = smul.u32 32, %s14
      %p350 = scmp.lt.s32.totalorder %s349, 63
      %s351 = scalar_select %p350, %s349, 63
      %s352 = smul.addr %s351, 8
      %s353 = scalar_lea.vmem %s3, %s352
      // Predicated region
      $region33: #{_lambda_.5} parent=31 // pred_check
        %p354 = pneg %p100
      $region34: #{_lambda_.5} parent=31 // pred_check_branch
        %356 = sbr.rel (%p354) target = $region36
      $region35: #{_lambda_.5} parent=31 // pred_region
        %s357 = smul.u32 32, %s14
      $region36: #{_lambda_.5} parent=31 // pred_fallthru
        _
    $region32: #{_lambda_.5} parent=5 // pred_fallthru
      _
    %p358 = scmp.le.s32.totalorder 2, %s9
    // Predicated region
    $region37: #{_lambda_.5} parent=5 // pred_check
      %p359 = pneg %p358
    $region38: #{_lambda_.5} parent=5 // pred_check_branch
      %361 = sbr.rel (%p359) target = $region40
    $region39: #{_lambda_.5} parent=5 // pred_region
      %s362 = ssub.s32 %s9, 2
      // Predicated region
      $region41: #{_lambda_.5} parent=39 // pred_check
        %p363 = pneg %p106
      $region42: #{_lambda_.5} parent=39 // pred_check_branch
        %365 = sbr.rel (%p363) target = $region44
      $region43: #{_lambda_.5} parent=39 // pred_region
        %s366 = smul.u32 32, %s15
        %p367 = scmp.lt.s32.totalorder %s366, 63
        %s368 = scalar_select %p367, %s366, 63
        %s369 = smul.addr %s368, 8
        %s370 = scalar_lea.vmem %s3, %s369
      $region44: #{_lambda_.5} parent=39 // pred_fallthru
        _
    $region40: #{_lambda_.5} parent=5 // pred_fallthru
      _
  $region6: #{_lambda_.5} parent=0 // loop_footer
    %s13 = sadd.s32 1, %s9
  $region7: #{_lambda_.5} parent=0 // loop_footer_branch
    %8 = sbr.rel target = $region3
  $region8: #{_lambda_.5} parent=0 // loop_exit
    _

</llo_original>
